<compile_context>
chip_gen: v6e
topology: v6e:2x2x1
jax: 0.10.0
libtpu: 0.0.40
codegen_flags: <defaults>
</compile_context>

<pallas_src>
import functools

import jax
import jax.numpy as jnp
from jax.experimental import pallas as pl
from jax.experimental.pallas import tpu as pltpu

GP = 128       # packed gate width: one 128-lane vreg holds [i | f | o | g]
SUBLANE = 8    # f32 sublane tile
FC1_DIM = 128
OUT_P = 128    # lane-dense padded output width (sliced to num_classes outside)


def _lstm_head_kernel(*refs, num_layers, seq_len, batch_p, hidden, eps):
    """Stacked LSTM + BatchNorm(eval) + FC head, whole forward in one kernel.

    refs (positional):
      x_ref                 (T*Bp, Dp) bf16   time-major, rows ordered t*Bp + b
      per layer l:          w_ih (Kp, 128) bf16, w_hh (128, 128) bf16,
                            bias (1, 128) f32
      bn gamma/beta/mean/var              (1, 128) f32
      fc1_w (128, 128) bf16, fc1_b (1, 128) f32
      fc2_w (128, 128) bf16, fc2_b (1, 128) f32
      out_ref               (Bp, 128) f32
      seq_ref (scratch)     (T*Bp, 128) f32   inter-layer hidden sequence

    Gate columns are packed [i | f | o | g], each `hidden` lanes wide, inside a
    single 128-lane block. The i/f/o columns (weights AND bias) were pre-scaled
    by 0.5 at pack time so sigmoid(z) = 0.5*tanh(0.5*z) + 0.5 reuses the single
    tanh pass the g gate needs: one EUP pass per step over the gate vreg.
    Lanes >= hidden of h/c carry bounded garbage that is annihilated by the
    zero-padded weight rows / BN gamma, so no per-step masking is needed.
    """
    n_in = 1 + 3 * num_layers + 8
    x_ref = refs[0]
    out_ref = refs[n_in]
    seq_ref = refs[n_in + 1]

    Bp = batch_p
    H = hidden

    layer_in = x_ref[...]                        # (T*Bp, Dp) bf16
    idx = 1
    h = None
    for layer in range(num_layers):
        w_ih = refs[idx][...]                    # (Kp, 128) bf16
        w_hh = refs[idx + 1][...]                # (128, 128) bf16
        b = refs[idx + 2][...]                   # (1, 128) f32
        idx += 3

        # Hoisted input projection for ALL timesteps + bias: one MXU call.
        x_proj = jnp.dot(layer_in, w_ih, preferred_element_type=jnp.float32) + b

        h = jnp.zeros((Bp, GP), jnp.float32)
        c = jnp.zeros((Bp, GP), jnp.float32)
        for t in range(seq_len):                 # tiny T -> unrolled straight-line
            # (8, 128) tile-aligned slice of the hoisted projection.
            gates = x_proj[t * Bp:(t + 1) * Bp, :] + jnp.dot(
                h.astype(jnp.bfloat16), w_hh,
                preferred_element_type=jnp.float32)
            tnh = jnp.tanh(gates)                # single EUP pass over the vreg
            sig = 0.5 * tnh + 0.5                # sigmoid of the unscaled i/f/o
            # Align each gate block with lanes [0, H) (np.roll semantics);
            # rolls land on the otherwise-idle XLU slot.
            i_g = sig
            f_g = pltpu.roll(sig, GP - H, 1)
            o_g = pltpu.roll(sig, GP - 2 * H, 1)
            g_g = pltpu.roll(tnh, GP - 3 * H, 1)
            c = f_g * c + i_g * g_g
            h = o_g * jnp.tanh(c)
            if layer < num_layers - 1:
                # Tile-aligned (8, 128) store of this step's hidden state.
                seq_ref[t * Bp:(t + 1) * Bp, :] = h
        if layer < num_layers - 1:
            # Inter-layer dropout = identity (eval mode).
            layer_in = seq_ref[...].astype(jnp.bfloat16)

    last = h                                     # lstm_out[:, -1, :] (padded)

    gamma = refs[idx][...]
    beta = refs[idx + 1][...]
    mean = refs[idx + 2][...]
    var = refs[idx + 3][...]
    w1 = refs[idx + 4][...]
    b1 = refs[idx + 5][...]
    w2 = refs[idx + 6][...]
    b2 = refs[idx + 7][...]

    # BatchNorm1d, eval mode (running statistics). gamma/beta zero-padding
    # zeroes the garbage lanes >= hidden of `last`.
    # TODO(synk): training-mode dropout / batch-statistics BN not implemented
    # (eval semantics only).
    bn = (last - mean) * jax.lax.rsqrt(var + eps) * gamma + beta

    # fc1 -> relu -> dropout(identity in eval) -> fc2 (lane-dense output).
    fc1 = jnp.maximum(
        jnp.dot(bn.astype(jnp.bfloat16), w1, preferred_element_type=jnp.float32) + b1,
        0.0)
    out_ref[...] = (
        jnp.dot(fc1.astype(jnp.bfloat16), w2, preferred_element_type=jnp.float32) + b2)


def pack_params(params, *, input_size, hidden_size, num_layers, num_classes):
    """One-time weight packing (run at model-load time; cache the result).

    Reorders PyTorch gate blocks [i|f|g|o] -> [i|f|o|g] inside one 128-lane
    block, pre-scales the i/f/o columns and biases by 0.5 (sigmoid-via-tanh),
    zero-pads everything to lane-dense (*, 128) slabs, and casts the matmul
    operands to bf16.
    """
    H = hidden_size
    assert 4 * H <= GP, "packed-gate layout requires 4 * hidden_size <= 128"
    Dp = max(GP, pl.cdiv(input_size, GP) * GP)

    def pack_cols(mat):  # (K, 4H) f32, PyTorch column order [i | f | g | o]
        i = mat[:, 0 * H:1 * H] * 0.5
        f = mat[:, 1 * H:2 * H] * 0.5
        g = mat[:, 2 * H:3 * H]
        o = mat[:, 3 * H:4 * H] * 0.5
        packed = jnp.concatenate([i, f, o, g], axis=1)
        return jnp.pad(packed, ((0, 0), (0, GP - 4 * H)))

    packed = []
    for l in range(num_layers):
        w_ih, w_hh, b_ih, b_hh = params[f"lstm_l{l}"]
        d_in = input_size if l == 0 else H
        d_pad = Dp if l == 0 else GP
        w_ih_p = jnp.pad(pack_cols(jnp.asarray(w_ih, jnp.float32).T),
                         ((0, d_pad - d_in), (0, 0))).astype(jnp.bfloat16)
        w_hh_p = jnp.pad(pack_cols(jnp.asarray(w_hh, jnp.float32).T),
                         ((0, GP - H), (0, 0))).astype(jnp.bfloat16)
        bias = (jnp.asarray(b_ih, jnp.float32)
                + jnp.asarray(b_hh, jnp.float32)).reshape(1, 4 * H)
        packed += [w_ih_p, w_hh_p, pack_cols(bias)]   # bias stays f32

    pad_h = (0, GP - H)
    packed += [
        jnp.pad(jnp.asarray(params["bn_gamma"], jnp.float32), pad_h).reshape(1, GP),
        jnp.pad(jnp.asarray(params["bn_beta"], jnp.float32), pad_h).reshape(1, GP),
        jnp.pad(jnp.asarray(params["bn_mean"], jnp.float32), pad_h).reshape(1, GP),
        jnp.pad(jnp.asarray(params["bn_var"], jnp.float32), pad_h,
                constant_values=1.0).reshape(1, GP),
        jnp.pad(jnp.asarray(params["fc1_w"], jnp.float32).T,
                (pad_h, (0, 0))).astype(jnp.bfloat16),               # (128, 128)
        jnp.asarray(params["fc1_b"], jnp.float32).reshape(1, FC1_DIM),
        jnp.pad(jnp.asarray(params["fc2_w"], jnp.float32).T,
                ((0, 0), (0, OUT_P - num_classes))).astype(jnp.bfloat16),
        jnp.pad(jnp.asarray(params["fc2_b"], jnp.float32),
                (0, OUT_P - num_classes)).reshape(1, OUT_P),
    ]
    return tuple(packed)


@functools.partial(jax.jit,
                   static_argnames=("hidden_size", "num_layers", "num_classes"))
def music_genre_lstm_forward(x, packed, *, hidden_size, num_layers, num_classes):
    B, T, D = x.shape
    Bp = max(SUBLANE, pl.cdiv(B, SUBLANE) * SUBLANE)
    Dp = max(GP, pl.cdiv(D, GP) * GP)

    # Per-call input prep only: pad batch to the sublane tile, go time-major,
    # lane-dense feature dim, bf16 for the MXU.
    x_p = jnp.pad(x.astype(jnp.float32), ((0, Bp - B), (0, 0), (0, Dp - D)))
    x_tb = jnp.transpose(x_p, (1, 0, 2)).reshape(T * Bp, Dp).astype(jnp.bfloat16)

    inputs = (x_tb,) + tuple(packed)

    # Advisory cost estimate for XLA scheduling around the custom call.
    flops = 0
    for l in range(num_layers):
        k_in = Dp if l == 0 else GP
        flops += 2 * (T * Bp) * k_in * GP          # hoisted input projection
        flops += 2 * T * Bp * GP * GP              # recurrent h @ W_hh
    flops += 2 * Bp * GP * FC1_DIM + 2 * Bp * FC1_DIM * OUT_P
    transcendentals = num_layers * T * 2 * Bp * GP
    bytes_accessed = (sum(int(a.size) * a.dtype.itemsize for a in inputs)
                      + Bp * OUT_P * 4)

    kernel = functools.partial(
        _lstm_head_kernel,
        num_layers=num_layers, seq_len=T, batch_p=Bp, hidden=hidden_size, eps=1e-5)

    out_padded = pl.pallas_call(
        kernel,
        out_shape=jax.ShapeDtypeStruct((Bp, OUT_P), jnp.float32),
        in_specs=[pl.BlockSpec(memory_space=pltpu.MemorySpace.VMEM)] * len(inputs),
        out_specs=pl.BlockSpec(memory_space=pltpu.MemorySpace.VMEM),
        scratch_shapes=[pltpu.VMEM((T * Bp, GP), jnp.float32)],
        cost_estimate=pl.CostEstimate(
            flops=int(flops),
            transcendentals=int(transcendentals),
            bytes_accessed=int(bytes_accessed)),
    )(*inputs)

    return out_padded[:B, :num_classes]


def _init_params(key, input_size, hidden_size, num_layers, num_classes):
    """Deterministic PyTorch-style init: U(-k, k) with k = 1/sqrt(hidden)."""
    params = {}
    k = 1.0 / jnp.sqrt(jnp.float32(hidden_size))

    def uniform(key, shape, scale):
        return jax.random.uniform(key, shape, jnp.float32, -scale, scale)

    for l in range(num_layers):
        d_in = input_size if l == 0 else hidden_size
        key, k1, k2, k3, k4 = jax.random.split(key, 5)
        params[f"lstm_l{l}"] = (
            uniform(k1, (4 * hidden_size, d_in), k),          # weight_ih_l{l}
            uniform(k2, (4 * hidden_size, hidden_size), k),   # weight_hh_l{l}
            uniform(k3, (4 * hidden_size,), k),               # bias_ih_l{l}
            uniform(k4, (4 * hidden_size,), k),               # bias_hh_l{l}
        )

    params["bn_gamma"] = jnp.ones((hidden_size,), jnp.float32)
    params["bn_beta"] = jnp.zeros((hidden_size,), jnp.float32)
    params["bn_mean"] = jnp.zeros((hidden_size,), jnp.float32)
    params["bn_var"] = jnp.ones((hidden_size,), jnp.float32)

    key, k1, k2, k3, k4 = jax.random.split(key, 5)
    kf1 = 1.0 / jnp.sqrt(jnp.float32(hidden_size))
    kf2 = 1.0 / jnp.sqrt(jnp.float32(FC1_DIM))
    params["fc1_w"] = uniform(k1, (FC1_DIM, hidden_size), kf1)
    params["fc1_b"] = uniform(k2, (FC1_DIM,), kf1)
    params["fc2_w"] = uniform(k3, (num_classes, FC1_DIM), kf2)
    params["fc2_b"] = uniform(k4, (num_classes,), kf2)
    return params


def _reference_forward(x, params, *, hidden_size, num_layers, eps=1e-5):
    """Pure-JAX f32 reference with PyTorch eval-mode semantics."""
    B, T, _ = x.shape
    H = hidden_size
    seq = x.astype(jnp.float32)
    for l in range(num_layers):
        w_ih, w_hh, b_ih, b_hh = params[f"lstm_l{l}"]
        h = jnp.zeros((B, H), jnp.float32)
        c = jnp.zeros((B, H), jnp.float32)
        outs = []
        for t in range(T):
            z = seq[:, t, :] @ w_ih.T + b_ih + h @ w_hh.T + b_hh
            i = jax.nn.sigmoid(z[:, 0 * H:1 * H])
            f = jax.nn.sigmoid(z[:, 1 * H:2 * H])
            g = jnp.tanh(z[:, 2 * H:3 * H])
            o = jax.nn.sigmoid(z[:, 3 * H:4 * H])
            c = f * c + i * g
            h = o * jnp.tanh(c)
            outs.append(h)
        seq = jnp.stack(outs, axis=1)
    last = seq[:, -1, :]
    bn = ((last - params["bn_mean"]) * jax.lax.rsqrt(params["bn_var"] + eps)
          * params["bn_gamma"] + params["bn_beta"])
    fc1 = jnp.maximum(bn @ params["fc1_w"].T + params["fc1_b"], 0.0)
    return fc1 @ params["fc2_w"].T + params["fc2_b"]


if __name__ == "__main__":
    # x: (batch=2, seq=8, input_size=16); hidden=32; num_layers=2; num_classes=10
    B, T, D = 2, 8, 16
    H, L, C = 32, 2, 10

    key = jax.random.PRNGKey(0)
    key, xk = jax.random.split(key)
    x = jax.random.normal(xk, (B, T, D), jnp.float32)

    params = _init_params(key, input_size=D, hidden_size=H, num_layers=L,
                          num_classes=C)

    # One-time (model-load) weight packing, cached across inference calls.
    packed = jax.block_until_ready(
        pack_params(params, input_size=D, hidden_size=H, num_layers=L,
                    num_classes=C))

    out = music_genre_lstm_forward(x, packed, hidden_size=H, num_layers=L,
                                   num_classes=C)
    out = jax.block_until_ready(out)

    assert out.shape == (B, C)
    assert bool(jnp.all(jnp.isfinite(out)))

    # Loose tolerance: MXU matmuls run in bf16 and compound over T steps / L layers.
    ref = _reference_forward(x, params, hidden_size=H, num_layers=L)
    assert bool(jnp.allclose(out, ref, rtol=5e-2, atol=5e-2)), (
        f"max abs err {float(jnp.max(jnp.abs(out - ref)))}")

    print("KERNEL_OK")
</pallas_src>

<mosaic_0001>
module attributes {stable_mosaic.version = 11 : i64} {
  func.func @_lstm_head_kernel(%arg0: memref<64x128xbf16, #tpu.memory_space<vmem>>, %arg1: memref<128x128xbf16, #tpu.memory_space<vmem>>, %arg2: memref<128x128xbf16, #tpu.memory_space<vmem>>, %arg3: memref<1x128xf32, #tpu.memory_space<vmem>>, %arg4: memref<128x128xbf16, #tpu.memory_space<vmem>>, %arg5: memref<128x128xbf16, #tpu.memory_space<vmem>>, %arg6: memref<1x128xf32, #tpu.memory_space<vmem>>, %arg7: memref<1x128xf32, #tpu.memory_space<vmem>>, %arg8: memref<1x128xf32, #tpu.memory_space<vmem>>, %arg9: memref<1x128xf32, #tpu.memory_space<vmem>>, %arg10: memref<1x128xf32, #tpu.memory_space<vmem>>, %arg11: memref<128x128xbf16, #tpu.memory_space<vmem>>, %arg12: memref<1x128xf32, #tpu.memory_space<vmem>>, %arg13: memref<128x128xbf16, #tpu.memory_space<vmem>>, %arg14: memref<1x128xf32, #tpu.memory_space<vmem>>, %arg15: memref<8x128xf32, #tpu.memory_space<vmem>>, %arg16: memref<64x128xf32, #tpu.memory_space<vmem>>) attributes {dimension_semantics = [], scalar_prefetch = 0 : i64, scratch_operands = 1 : i64, tpu.core_type = #tpu.core_type<tc>} {
    %c0 = arith.constant 0 : index
    %c0_0 = arith.constant 0 : index
    %0 = vector.load %arg0[%c0, %c0_0] : memref<64x128xbf16, #tpu.memory_space<vmem>>, vector<64x128xbf16>
    %c0_1 = arith.constant 0 : index
    %c0_2 = arith.constant 0 : index
    %1 = vector.load %arg1[%c0_1, %c0_2] : memref<128x128xbf16, #tpu.memory_space<vmem>>, vector<128x128xbf16>
    %c0_3 = arith.constant 0 : index
    %c0_4 = arith.constant 0 : index
    %2 = vector.load %arg2[%c0_3, %c0_4] : memref<128x128xbf16, #tpu.memory_space<vmem>>, vector<128x128xbf16>
    %c0_5 = arith.constant 0 : index
    %c0_6 = arith.constant 0 : index
    %3 = vector.load %arg3[%c0_5, %c0_6] : memref<1x128xf32, #tpu.memory_space<vmem>>, vector<1x128xf32>
    %cst = arith.constant dense<0.000000e+00> : vector<64x128xf32>
    %4 = tpu.matmul %0, %1, %cst {dimension_numbers = #tpu.dot_dimension_numbers<[1], [0], [0], [1], [0, 0, 1, 1], [], []>} : vector<64x128xbf16>, vector<128x128xbf16>, vector<64x128xf32> -> vector<64x128xf32>
    %5 = vector.broadcast %3 : vector<1x128xf32> to vector<64x128xf32>
    %6 = arith.addf %4, %5 : vector<64x128xf32>
    %cst_7 = arith.constant 0.000000e+00 : f32
    %7 = vector.broadcast %cst_7 : f32 to vector<8x128xf32>
    %cst_8 = arith.constant 0.000000e+00 : f32
    %8 = vector.broadcast %cst_8 : f32 to vector<8x128xf32>
    %9 = vector.extract_strided_slice %6 {offsets = [0, 0], sizes = [8, 128], strides = [1, 1]} : vector<64x128xf32> to vector<8x128xf32>
    %10 = arith.truncf %7 : vector<8x128xf32> to vector<8x128xbf16>
    %cst_9 = arith.constant dense<0.000000e+00> : vector<8x128xf32>
    %11 = tpu.matmul %10, %2, %cst_9 {dimension_numbers = #tpu.dot_dimension_numbers<[1], [0], [0], [1], [0, 0, 1, 1], [], []>} : vector<8x128xbf16>, vector<128x128xbf16>, vector<8x128xf32> -> vector<8x128xf32>
    %12 = arith.addf %9, %11 : vector<8x128xf32>
    %13 = math.tanh %12 : vector<8x128xf32>
    %cst_10 = arith.constant 5.000000e-01 : f32
    %14 = vector.broadcast %cst_10 : f32 to vector<8x128xf32>
    %15 = arith.mulf %14, %13 : vector<8x128xf32>
    %cst_11 = arith.constant 5.000000e-01 : f32
    %16 = vector.broadcast %cst_11 : f32 to vector<8x128xf32>
    %17 = arith.addf %15, %16 : vector<8x128xf32>
    %c96_i32 = arith.constant 96 : i32
    %18 = tpu.dynamic_rotate %17 by %c96_i32 dim 1 : vector<8x128xf32>, i32 -> vector<8x128xf32>
    %c64_i32 = arith.constant 64 : i32
    %19 = tpu.dynamic_rotate %17 by %c64_i32 dim 1 : vector<8x128xf32>, i32 -> vector<8x128xf32>
    %c32_i32 = arith.constant 32 : i32
    %20 = tpu.dynamic_rotate %13 by %c32_i32 dim 1 : vector<8x128xf32>, i32 -> vector<8x128xf32>
    %21 = arith.mulf %18, %8 : vector<8x128xf32>
    %22 = arith.mulf %17, %20 : vector<8x128xf32>
    %23 = arith.addf %21, %22 : vector<8x128xf32>
    %24 = math.tanh %23 : vector<8x128xf32>
    %25 = arith.mulf %19, %24 : vector<8x128xf32>
    %c0_12 = arith.constant 0 : index
    %c0_13 = arith.constant 0 : index
    %26 = vector.load %arg16[%c0_12, %c0_13] : memref<64x128xf32, #tpu.memory_space<vmem>>, vector<8x128xf32>
    tpu.vector_store %arg16[%c0_12, %c0_13], %25 {strides = array<i32>} : memref<64x128xf32, #tpu.memory_space<vmem>>, vector<8x128xf32>,
    %27 = vector.extract_strided_slice %6 {offsets = [8, 0], sizes = [8, 128], strides = [1, 1]} : vector<64x128xf32> to vector<8x128xf32>
    %28 = arith.truncf %25 : vector<8x128xf32> to vector<8x128xbf16>
    %cst_14 = arith.constant dense<0.000000e+00> : vector<8x128xf32>
    %29 = tpu.matmul %28, %2, %cst_14 {dimension_numbers = #tpu.dot_dimension_numbers<[1], [0], [0], [1], [0, 0, 1, 1], [], []>} : vector<8x128xbf16>, vector<128x128xbf16>, vector<8x128xf32> -> vector<8x128xf32>
    %30 = arith.addf %27, %29 : vector<8x128xf32>
    %31 = math.tanh %30 : vector<8x128xf32>
    %cst_15 = arith.constant 5.000000e-01 : f32
    %32 = vector.broadcast %cst_15 : f32 to vector<8x128xf32>
    %33 = arith.mulf %32, %31 : vector<8x128xf32>
    %cst_16 = arith.constant 5.000000e-01 : f32
    %34 = vector.broadcast %cst_16 : f32 to vector<8x128xf32>
    %35 = arith.addf %33, %34 : vector<8x128xf32>
    %c96_i32_17 = arith.constant 96 : i32
    %36 = tpu.dynamic_rotate %35 by %c96_i32_17 dim 1 : vector<8x128xf32>, i32 -> vector<8x128xf32>
    %c64_i32_18 = arith.constant 64 : i32
    %37 = tpu.dynamic_rotate %35 by %c64_i32_18 dim 1 : vector<8x128xf32>, i32 -> vector<8x128xf32>
    %c32_i32_19 = arith.constant 32 : i32
    %38 = tpu.dynamic_rotate %31 by %c32_i32_19 dim 1 : vector<8x128xf32>, i32 -> vector<8x128xf32>
    %39 = arith.mulf %36, %23 : vector<8x128xf32>
    %40 = arith.mulf %35, %38 : vector<8x128xf32>
    %41 = arith.addf %39, %40 : vector<8x128xf32>
    %42 = math.tanh %41 : vector<8x128xf32>
    %43 = arith.mulf %37, %42 : vector<8x128xf32>
    %c8 = arith.constant 8 : index
    %c0_20 = arith.constant 0 : index
    %44 = vector.load %arg16[%c8, %c0_20] : memref<64x128xf32, #tpu.memory_space<vmem>>, vector<8x128xf32>
    tpu.vector_store %arg16[%c8, %c0_20], %43 {strides = array<i32>} : memref<64x128xf32, #tpu.memory_space<vmem>>, vector<8x128xf32>,
    %45 = vector.extract_strided_slice %6 {offsets = [16, 0], sizes = [8, 128], strides = [1, 1]} : vector<64x128xf32> to vector<8x128xf32>
    %46 = arith.truncf %43 : vector<8x128xf32> to vector<8x128xbf16>
    %cst_21 = arith.constant dense<0.000000e+00> : vector<8x128xf32>
    %47 = tpu.matmul %46, %2, %cst_21 {dimension_numbers = #tpu.dot_dimension_numbers<[1], [0], [0], [1], [0, 0, 1, 1], [], []>} : vector<8x128xbf16>, vector<128x128xbf16>, vector<8x128xf32> -> vector<8x128xf32>
    %48 = arith.addf %45, %47 : vector<8x128xf32>
    %49 = math.tanh %48 : vector<8x128xf32>
    %cst_22 = arith.constant 5.000000e-01 : f32
    %50 = vector.broadcast %cst_22 : f32 to vector<8x128xf32>
    %51 = arith.mulf %50, %49 : vector<8x128xf32>
    %cst_23 = arith.constant 5.000000e-01 : f32
    %52 = vector.broadcast %cst_23 : f32 to vector<8x128xf32>
    %53 = arith.addf %51, %52 : vector<8x128xf32>
    %c96_i32_24 = arith.constant 96 : i32
    %54 = tpu.dynamic_rotate %53 by %c96_i32_24 dim 1 : vector<8x128xf32>, i32 -> vector<8x128xf32>
    %c64_i32_25 = arith.constant 64 : i32
    %55 = tpu.dynamic_rotate %53 by %c64_i32_25 dim 1 : vector<8x128xf32>, i32 -> vector<8x128xf32>
    %c32_i32_26 = arith.constant 32 : i32
    %56 = tpu.dynamic_rotate %49 by %c32_i32_26 dim 1 : vector<8x128xf32>, i32 -> vector<8x128xf32>
    %57 = arith.mulf %54, %41 : vector<8x128xf32>
    %58 = arith.mulf %53, %56 : vector<8x128xf32>
    %59 = arith.addf %57, %58 : vector<8x128xf32>
    %60 = math.tanh %59 : vector<8x128xf32>
    %61 = arith.mulf %55, %60 : vector<8x128xf32>
    %c16 = arith.constant 16 : index
    %c0_27 = arith.constant 0 : index
    %62 = vector.load %arg16[%c16, %c0_27] : memref<64x128xf32, #tpu.memory_space<vmem>>, vector<8x128xf32>
    tpu.vector_store %arg16[%c16, %c0_27], %61 {strides = array<i32>} : memref<64x128xf32, #tpu.memory_space<vmem>>, vector<8x128xf32>,
    %63 = vector.extract_strided_slice %6 {offsets = [24, 0], sizes = [8, 128], strides = [1, 1]} : vector<64x128xf32> to vector<8x128xf32>
    %64 = arith.truncf %61 : vector<8x128xf32> to vector<8x128xbf16>
    %cst_28 = arith.constant dense<0.000000e+00> : vector<8x128xf32>
    %65 = tpu.matmul %64, %2, %cst_28 {dimension_numbers = #tpu.dot_dimension_numbers<[1], [0], [0], [1], [0, 0, 1, 1], [], []>} : vector<8x128xbf16>, vector<128x128xbf16>, vector<8x128xf32> -> vector<8x128xf32>
    %66 = arith.addf %63, %65 : vector<8x128xf32>
    %67 = math.tanh %66 : vector<8x128xf32>
    %cst_29 = arith.constant 5.000000e-01 : f32
    %68 = vector.broadcast %cst_29 : f32 to vector<8x128xf32>
    %69 = arith.mulf %68, %67 : vector<8x128xf32>
    %cst_30 = arith.constant 5.000000e-01 : f32
    %70 = vector.broadcast %cst_30 : f32 to vector<8x128xf32>
    %71 = arith.addf %69, %70 : vector<8x128xf32>
    %c96_i32_31 = arith.constant 96 : i32
    %72 = tpu.dynamic_rotate %71 by %c96_i32_31 dim 1 : vector<8x128xf32>, i32 -> vector<8x128xf32>
    %c64_i32_32 = arith.constant 64 : i32
    %73 = tpu.dynamic_rotate %71 by %c64_i32_32 dim 1 : vector<8x128xf32>, i32 -> vector<8x128xf32>
    %c32_i32_33 = arith.constant 32 : i32
    %74 = tpu.dynamic_rotate %67 by %c32_i32_33 dim 1 : vector<8x128xf32>, i32 -> vector<8x128xf32>
    %75 = arith.mulf %72, %59 : vector<8x128xf32>
    %76 = arith.mulf %71, %74 : vector<8x128xf32>
    %77 = arith.addf %75, %76 : vector<8x128xf32>
    %78 = math.tanh %77 : vector<8x128xf32>
    %79 = arith.mulf %73, %78 : vector<8x128xf32>
    %c24 = arith.constant 24 : index
    %c0_34 = arith.constant 0 : index
    %80 = vector.load %arg16[%c24, %c0_34] : memref<64x128xf32, #tpu.memory_space<vmem>>, vector<8x128xf32>
    tpu.vector_store %arg16[%c24, %c0_34], %79 {strides = array<i32>} : memref<64x128xf32, #tpu.memory_space<vmem>>, vector<8x128xf32>,
    %81 = vector.extract_strided_slice %6 {offsets = [32, 0], sizes = [8, 128], strides = [1, 1]} : vector<64x128xf32> to vector<8x128xf32>
    %82 = arith.truncf %79 : vector<8x128xf32> to vector<8x128xbf16>
    %cst_35 = arith.constant dense<0.000000e+00> : vector<8x128xf32>
    %83 = tpu.matmul %82, %2, %cst_35 {dimension_numbers = #tpu.dot_dimension_numbers<[1], [0], [0], [1], [0, 0, 1, 1], [], []>} : vector<8x128xbf16>, vector<128x128xbf16>, vector<8x128xf32> -> vector<8x128xf32>
    %84 = arith.addf %81, %83 : vector<8x128xf32>
    %85 = math.tanh %84 : vector<8x128xf32>
    %cst_36 = arith.constant 5.000000e-01 : f32
    %86 = vector.broadcast %cst_36 : f32 to vector<8x128xf32>
    %87 = arith.mulf %86, %85 : vector<8x128xf32>
    %cst_37 = arith.constant 5.000000e-01 : f32
    %88 = vector.broadcast %cst_37 : f32 to vector<8x128xf32>
    %89 = arith.addf %87, %88 : vector<8x128xf32>
    %c96_i32_38 = arith.constant 96 : i32
    %90 = tpu.dynamic_rotate %89 by %c96_i32_38 dim 1 : vector<8x128xf32>, i32 -> vector<8x128xf32>
    %c64_i32_39 = arith.constant 64 : i32
    %91 = tpu.dynamic_rotate %89 by %c64_i32_39 dim 1 : vector<8x128xf32>, i32 -> vector<8x128xf32>
    %c32_i32_40 = arith.constant 32 : i32
    %92 = tpu.dynamic_rotate %85 by %c32_i32_40 dim 1 : vector<8x128xf32>, i32 -> vector<8x128xf32>
    %93 = arith.mulf %90, %77 : vector<8x128xf32>
    %94 = arith.mulf %89, %92 : vector<8x128xf32>
    %95 = arith.addf %93, %94 : vector<8x128xf32>
    %96 = math.tanh %95 : vector<8x128xf32>
    %97 = arith.mulf %91, %96 : vector<8x128xf32>
    %c32 = arith.constant 32 : index
    %c0_41 = arith.constant 0 : index
    %98 = vector.load %arg16[%c32, %c0_41] : memref<64x128xf32, #tpu.memory_space<vmem>>, vector<8x128xf32>
    tpu.vector_store %arg16[%c32, %c0_41], %97 {strides = array<i32>} : memref<64x128xf32, #tpu.memory_space<vmem>>, vector<8x128xf32>,
    %99 = vector.extract_strided_slice %6 {offsets = [40, 0], sizes = [8, 128], strides = [1, 1]} : vector<64x128xf32> to vector<8x128xf32>
    %100 = arith.truncf %97 : vector<8x128xf32> to vector<8x128xbf16>
    %cst_42 = arith.constant dense<0.000000e+00> : vector<8x128xf32>
    %101 = tpu.matmul %100, %2, %cst_42 {dimension_numbers = #tpu.dot_dimension_numbers<[1], [0], [0], [1], [0, 0, 1, 1], [], []>} : vector<8x128xbf16>, vector<128x128xbf16>, vector<8x128xf32> -> vector<8x128xf32>
    %102 = arith.addf %99, %101 : vector<8x128xf32>
    %103 = math.tanh %102 : vector<8x128xf32>
    %cst_43 = arith.constant 5.000000e-01 : f32
    %104 = vector.broadcast %cst_43 : f32 to vector<8x128xf32>
    %105 = arith.mulf %104, %103 : vector<8x128xf32>
    %cst_44 = arith.constant 5.000000e-01 : f32
    %106 = vector.broadcast %cst_44 : f32 to vector<8x128xf32>
    %107 = arith.addf %105, %106 : vector<8x128xf32>
    %c96_i32_45 = arith.constant 96 : i32
    %108 = tpu.dynamic_rotate %107 by %c96_i32_45 dim 1 : vector<8x128xf32>, i32 -> vector<8x128xf32>
    %c64_i32_46 = arith.constant 64 : i32
    %109 = tpu.dynamic_rotate %107 by %c64_i32_46 dim 1 : vector<8x128xf32>, i32 -> vector<8x128xf32>
    %c32_i32_47 = arith.constant 32 : i32
    %110 = tpu.dynamic_rotate %103 by %c32_i32_47 dim 1 : vector<8x128xf32>, i32 -> vector<8x128xf32>
    %111 = arith.mulf %108, %95 : vector<8x128xf32>
    %112 = arith.mulf %107, %110 : vector<8x128xf32>
    %113 = arith.addf %111, %112 : vector<8x128xf32>
    %114 = math.tanh %113 : vector<8x128xf32>
    %115 = arith.mulf %109, %114 : vector<8x128xf32>
    %c40 = arith.constant 40 : index
    %c0_48 = arith.constant 0 : index
    %116 = vector.load %arg16[%c40, %c0_48] : memref<64x128xf32, #tpu.memory_space<vmem>>, vector<8x128xf32>
    tpu.vector_store %arg16[%c40, %c0_48], %115 {strides = array<i32>} : memref<64x128xf32, #tpu.memory_space<vmem>>, vector<8x128xf32>,
    %117 = vector.extract_strided_slice %6 {offsets = [48, 0], sizes = [8, 128], strides = [1, 1]} : vector<64x128xf32> to vector<8x128xf32>
    %118 = arith.truncf %115 : vector<8x128xf32> to vector<8x128xbf16>
    %cst_49 = arith.constant dense<0.000000e+00> : vector<8x128xf32>
    %119 = tpu.matmul %118, %2, %cst_49 {dimension_numbers = #tpu.dot_dimension_numbers<[1], [0], [0], [1], [0, 0, 1, 1], [], []>} : vector<8x128xbf16>, vector<128x128xbf16>, vector<8x128xf32> -> vector<8x128xf32>
    %120 = arith.addf %117, %119 : vector<8x128xf32>
    %121 = math.tanh %120 : vector<8x128xf32>
    %cst_50 = arith.constant 5.000000e-01 : f32
    %122 = vector.broadcast %cst_50 : f32 to vector<8x128xf32>
    %123 = arith.mulf %122, %121 : vector<8x128xf32>
    %cst_51 = arith.constant 5.000000e-01 : f32
    %124 = vector.broadcast %cst_51 : f32 to vector<8x128xf32>
    %125 = arith.addf %123, %124 : vector<8x128xf32>
    %c96_i32_52 = arith.constant 96 : i32
    %126 = tpu.dynamic_rotate %125 by %c96_i32_52 dim 1 : vector<8x128xf32>, i32 -> vector<8x128xf32>
    %c64_i32_53 = arith.constant 64 : i32
    %127 = tpu.dynamic_rotate %125 by %c64_i32_53 dim 1 : vector<8x128xf32>, i32 -> vector<8x128xf32>
    %c32_i32_54 = arith.constant 32 : i32
    %128 = tpu.dynamic_rotate %121 by %c32_i32_54 dim 1 : vector<8x128xf32>, i32 -> vector<8x128xf32>
    %129 = arith.mulf %126, %113 : vector<8x128xf32>
    %130 = arith.mulf %125, %128 : vector<8x128xf32>
    %131 = arith.addf %129, %130 : vector<8x128xf32>
    %132 = math.tanh %131 : vector<8x128xf32>
    %133 = arith.mulf %127, %132 : vector<8x128xf32>
    %c48 = arith.constant 48 : index
    %c0_55 = arith.constant 0 : index
    %134 = vector.load %arg16[%c48, %c0_55] : memref<64x128xf32, #tpu.memory_space<vmem>>, vector<8x128xf32>
    tpu.vector_store %arg16[%c48, %c0_55], %133 {strides = array<i32>} : memref<64x128xf32, #tpu.memory_space<vmem>>, vector<8x128xf32>,
    %135 = vector.extract_strided_slice %6 {offsets = [56, 0], sizes = [8, 128], strides = [1, 1]} : vector<64x128xf32> to vector<8x128xf32>
    %136 = arith.truncf %133 : vector<8x128xf32> to vector<8x128xbf16>
    %cst_56 = arith.constant dense<0.000000e+00> : vector<8x128xf32>
    %137 = tpu.matmul %136, %2, %cst_56 {dimension_numbers = #tpu.dot_dimension_numbers<[1], [0], [0], [1], [0, 0, 1, 1], [], []>} : vector<8x128xbf16>, vector<128x128xbf16>, vector<8x128xf32> -> vector<8x128xf32>
    %138 = arith.addf %135, %137 : vector<8x128xf32>
    %139 = math.tanh %138 : vector<8x128xf32>
    %cst_57 = arith.constant 5.000000e-01 : f32
    %140 = vector.broadcast %cst_57 : f32 to vector<8x128xf32>
    %141 = arith.mulf %140, %139 : vector<8x128xf32>
    %cst_58 = arith.constant 5.000000e-01 : f32
    %142 = vector.broadcast %cst_58 : f32 to vector<8x128xf32>
    %143 = arith.addf %141, %142 : vector<8x128xf32>
    %c96_i32_59 = arith.constant 96 : i32
    %144 = tpu.dynamic_rotate %143 by %c96_i32_59 dim 1 : vector<8x128xf32>, i32 -> vector<8x128xf32>
    %c64_i32_60 = arith.constant 64 : i32
    %145 = tpu.dynamic_rotate %143 by %c64_i32_60 dim 1 : vector<8x128xf32>, i32 -> vector<8x128xf32>
    %c32_i32_61 = arith.constant 32 : i32
    %146 = tpu.dynamic_rotate %139 by %c32_i32_61 dim 1 : vector<8x128xf32>, i32 -> vector<8x128xf32>
    %147 = arith.mulf %144, %131 : vector<8x128xf32>
    %148 = arith.mulf %143, %146 : vector<8x128xf32>
    %149 = arith.addf %147, %148 : vector<8x128xf32>
    %150 = math.tanh %149 : vector<8x128xf32>
    %151 = arith.mulf %145, %150 : vector<8x128xf32>
    %c56 = arith.constant 56 : index
    %c0_62 = arith.constant 0 : index
    %152 = vector.load %arg16[%c56, %c0_62] : memref<64x128xf32, #tpu.memory_space<vmem>>, vector<8x128xf32>
    tpu.vector_store %arg16[%c56, %c0_62], %151 {strides = array<i32>} : memref<64x128xf32, #tpu.memory_space<vmem>>, vector<8x128xf32>,
    %c0_63 = arith.constant 0 : index
    %c0_64 = arith.constant 0 : index
    %153 = vector.load %arg16[%c0_63, %c0_64] : memref<64x128xf32, #tpu.memory_space<vmem>>, vector<64x128xf32>
    %154 = arith.truncf %153 : vector<64x128xf32> to vector<64x128xbf16>
    %c0_65 = arith.constant 0 : index
    %c0_66 = arith.constant 0 : index
    %155 = vector.load %arg4[%c0_65, %c0_66] : memref<128x128xbf16, #tpu.memory_space<vmem>>, vector<128x128xbf16>
    %c0_67 = arith.constant 0 : index
    %c0_68 = arith.constant 0 : index
    %156 = vector.load %arg5[%c0_67, %c0_68] : memref<128x128xbf16, #tpu.memory_space<vmem>>, vector<128x128xbf16>
    %c0_69 = arith.constant 0 : index
    %c0_70 = arith.constant 0 : index
    %157 = vector.load %arg6[%c0_69, %c0_70] : memref<1x128xf32, #tpu.memory_space<vmem>>, vector<1x128xf32>
    %cst_71 = arith.constant dense<0.000000e+00> : vector<64x128xf32>
    %158 = tpu.matmul %154, %155, %cst_71 {dimension_numbers = #tpu.dot_dimension_numbers<[1], [0], [0], [1], [0, 0, 1, 1], [], []>} : vector<64x128xbf16>, vector<128x128xbf16>, vector<64x128xf32> -> vector<64x128xf32>
    %159 = vector.broadcast %157 : vector<1x128xf32> to vector<64x128xf32>
    %160 = arith.addf %158, %159 : vector<64x128xf32>
    %cst_72 = arith.constant 0.000000e+00 : f32
    %161 = vector.broadcast %cst_72 : f32 to vector<8x128xf32>
    %cst_73 = arith.constant 0.000000e+00 : f32
    %162 = vector.broadcast %cst_73 : f32 to vector<8x128xf32>
    %163 = vector.extract_strided_slice %160 {offsets = [0, 0], sizes = [8, 128], strides = [1, 1]} : vector<64x128xf32> to vector<8x128xf32>
    %164 = arith.truncf %161 : vector<8x128xf32> to vector<8x128xbf16>
    %cst_74 = arith.constant dense<0.000000e+00> : vector<8x128xf32>
    %165 = tpu.matmul %164, %156, %cst_74 {dimension_numbers = #tpu.dot_dimension_numbers<[1], [0], [0], [1], [0, 0, 1, 1], [], []>} : vector<8x128xbf16>, vector<128x128xbf16>, vector<8x128xf32> -> vector<8x128xf32>
    %166 = arith.addf %163, %165 : vector<8x128xf32>
    %167 = math.tanh %166 : vector<8x128xf32>
    %cst_75 = arith.constant 5.000000e-01 : f32
    %168 = vector.broadcast %cst_75 : f32 to vector<8x128xf32>
    %169 = arith.mulf %168, %167 : vector<8x128xf32>
    %cst_76 = arith.constant 5.000000e-01 : f32
    %170 = vector.broadcast %cst_76 : f32 to vector<8x128xf32>
    %171 = arith.addf %169, %170 : vector<8x128xf32>
    %c96_i32_77 = arith.constant 96 : i32
    %172 = tpu.dynamic_rotate %171 by %c96_i32_77 dim 1 : vector<8x128xf32>, i32 -> vector<8x128xf32>
    %c64_i32_78 = arith.constant 64 : i32
    %173 = tpu.dynamic_rotate %171 by %c64_i32_78 dim 1 : vector<8x128xf32>, i32 -> vector<8x128xf32>
    %c32_i32_79 = arith.constant 32 : i32
    %174 = tpu.dynamic_rotate %167 by %c32_i32_79 dim 1 : vector<8x128xf32>, i32 -> vector<8x128xf32>
    %175 = arith.mulf %172, %162 : vector<8x128xf32>
    %176 = arith.mulf %171, %174 : vector<8x128xf32>
    %177 = arith.addf %175, %176 : vector<8x128xf32>
    %178 = math.tanh %177 : vector<8x128xf32>
    %179 = arith.mulf %173, %178 : vector<8x128xf32>
    %180 = vector.extract_strided_slice %160 {offsets = [8, 0], sizes = [8, 128], strides = [1, 1]} : vector<64x128xf32> to vector<8x128xf32>
    %181 = arith.truncf %179 : vector<8x128xf32> to vector<8x128xbf16>
    %cst_80 = arith.constant dense<0.000000e+00> : vector<8x128xf32>
    %182 = tpu.matmul %181, %156, %cst_80 {dimension_numbers = #tpu.dot_dimension_numbers<[1], [0], [0], [1], [0, 0, 1, 1], [], []>} : vector<8x128xbf16>, vector<128x128xbf16>, vector<8x128xf32> -> vector<8x128xf32>
    %183 = arith.addf %180, %182 : vector<8x128xf32>
    %184 = math.tanh %183 : vector<8x128xf32>
    %cst_81 = arith.constant 5.000000e-01 : f32
    %185 = vector.broadcast %cst_81 : f32 to vector<8x128xf32>
    %186 = arith.mulf %185, %184 : vector<8x128xf32>
    %cst_82 = arith.constant 5.000000e-01 : f32
    %187 = vector.broadcast %cst_82 : f32 to vector<8x128xf32>
    %188 = arith.addf %186, %187 : vector<8x128xf32>
    %c96_i32_83 = arith.constant 96 : i32
    %189 = tpu.dynamic_rotate %188 by %c96_i32_83 dim 1 : vector<8x128xf32>, i32 -> vector<8x128xf32>
    %c64_i32_84 = arith.constant 64 : i32
    %190 = tpu.dynamic_rotate %188 by %c64_i32_84 dim 1 : vector<8x128xf32>, i32 -> vector<8x128xf32>
    %c32_i32_85 = arith.constant 32 : i32
    %191 = tpu.dynamic_rotate %184 by %c32_i32_85 dim 1 : vector<8x128xf32>, i32 -> vector<8x128xf32>
    %192 = arith.mulf %189, %177 : vector<8x128xf32>
    %193 = arith.mulf %188, %191 : vector<8x128xf32>
    %194 = arith.addf %192, %193 : vector<8x128xf32>
    %195 = math.tanh %194 : vector<8x128xf32>
    %196 = arith.mulf %190, %195 : vector<8x128xf32>
    %197 = vector.extract_strided_slice %160 {offsets = [16, 0], sizes = [8, 128], strides = [1, 1]} : vector<64x128xf32> to vector<8x128xf32>
    %198 = arith.truncf %196 : vector<8x128xf32> to vector<8x128xbf16>
    %cst_86 = arith.constant dense<0.000000e+00> : vector<8x128xf32>
    %199 = tpu.matmul %198, %156, %cst_86 {dimension_numbers = #tpu.dot_dimension_numbers<[1], [0], [0], [1], [0, 0, 1, 1], [], []>} : vector<8x128xbf16>, vector<128x128xbf16>, vector<8x128xf32> -> vector<8x128xf32>
    %200 = arith.addf %197, %199 : vector<8x128xf32>
    %201 = math.tanh %200 : vector<8x128xf32>
    %cst_87 = arith.constant 5.000000e-01 : f32
    %202 = vector.broadcast %cst_87 : f32 to vector<8x128xf32>
    %203 = arith.mulf %202, %201 : vector<8x128xf32>
    %cst_88 = arith.constant 5.000000e-01 : f32
    %204 = vector.broadcast %cst_88 : f32 to vector<8x128xf32>
    %205 = arith.addf %203, %204 : vector<8x128xf32>
    %c96_i32_89 = arith.constant 96 : i32
    %206 = tpu.dynamic_rotate %205 by %c96_i32_89 dim 1 : vector<8x128xf32>, i32 -> vector<8x128xf32>
    %c64_i32_90 = arith.constant 64 : i32
    %207 = tpu.dynamic_rotate %205 by %c64_i32_90 dim 1 : vector<8x128xf32>, i32 -> vector<8x128xf32>
    %c32_i32_91 = arith.constant 32 : i32
    %208 = tpu.dynamic_rotate %201 by %c32_i32_91 dim 1 : vector<8x128xf32>, i32 -> vector<8x128xf32>
    %209 = arith.mulf %206, %194 : vector<8x128xf32>
    %210 = arith.mulf %205, %208 : vector<8x128xf32>
    %211 = arith.addf %209, %210 : vector<8x128xf32>
    %212 = math.tanh %211 : vector<8x128xf32>
    %213 = arith.mulf %207, %212 : vector<8x128xf32>
    %214 = vector.extract_strided_slice %160 {offsets = [24, 0], sizes = [8, 128], strides = [1, 1]} : vector<64x128xf32> to vector<8x128xf32>
    %215 = arith.truncf %213 : vector<8x128xf32> to vector<8x128xbf16>
    %cst_92 = arith.constant dense<0.000000e+00> : vector<8x128xf32>
    %216 = tpu.matmul %215, %156, %cst_92 {dimension_numbers = #tpu.dot_dimension_numbers<[1], [0], [0], [1], [0, 0, 1, 1], [], []>} : vector<8x128xbf16>, vector<128x128xbf16>, vector<8x128xf32> -> vector<8x128xf32>
    %217 = arith.addf %214, %216 : vector<8x128xf32>
    %218 = math.tanh %217 : vector<8x128xf32>
    %cst_93 = arith.constant 5.000000e-01 : f32
    %219 = vector.broadcast %cst_93 : f32 to vector<8x128xf32>
    %220 = arith.mulf %219, %218 : vector<8x128xf32>
    %cst_94 = arith.constant 5.000000e-01 : f32
    %221 = vector.broadcast %cst_94 : f32 to vector<8x128xf32>
    %222 = arith.addf %220, %221 : vector<8x128xf32>
    %c96_i32_95 = arith.constant 96 : i32
    %223 = tpu.dynamic_rotate %222 by %c96_i32_95 dim 1 : vector<8x128xf32>, i32 -> vector<8x128xf32>
    %c64_i32_96 = arith.constant 64 : i32
    %224 = tpu.dynamic_rotate %222 by %c64_i32_96 dim 1 : vector<8x128xf32>, i32 -> vector<8x128xf32>
    %c32_i32_97 = arith.constant 32 : i32
    %225 = tpu.dynamic_rotate %218 by %c32_i32_97 dim 1 : vector<8x128xf32>, i32 -> vector<8x128xf32>
    %226 = arith.mulf %223, %211 : vector<8x128xf32>
    %227 = arith.mulf %222, %225 : vector<8x128xf32>
    %228 = arith.addf %226, %227 : vector<8x128xf32>
    %229 = math.tanh %228 : vector<8x128xf32>
    %230 = arith.mulf %224, %229 : vector<8x128xf32>
    %231 = vector.extract_strided_slice %160 {offsets = [32, 0], sizes = [8, 128], strides = [1, 1]} : vector<64x128xf32> to vector<8x128xf32>
    %232 = arith.truncf %230 : vector<8x128xf32> to vector<8x128xbf16>
    %cst_98 = arith.constant dense<0.000000e+00> : vector<8x128xf32>
    %233 = tpu.matmul %232, %156, %cst_98 {dimension_numbers = #tpu.dot_dimension_numbers<[1], [0], [0], [1], [0, 0, 1, 1], [], []>} : vector<8x128xbf16>, vector<128x128xbf16>, vector<8x128xf32> -> vector<8x128xf32>
    %234 = arith.addf %231, %233 : vector<8x128xf32>
    %235 = math.tanh %234 : vector<8x128xf32>
    %cst_99 = arith.constant 5.000000e-01 : f32
    %236 = vector.broadcast %cst_99 : f32 to vector<8x128xf32>
    %237 = arith.mulf %236, %235 : vector<8x128xf32>
    %cst_100 = arith.constant 5.000000e-01 : f32
    %238 = vector.broadcast %cst_100 : f32 to vector<8x128xf32>
    %239 = arith.addf %237, %238 : vector<8x128xf32>
    %c96_i32_101 = arith.constant 96 : i32
    %240 = tpu.dynamic_rotate %239 by %c96_i32_101 dim 1 : vector<8x128xf32>, i32 -> vector<8x128xf32>
    %c64_i32_102 = arith.constant 64 : i32
    %241 = tpu.dynamic_rotate %239 by %c64_i32_102 dim 1 : vector<8x128xf32>, i32 -> vector<8x128xf32>
    %c32_i32_103 = arith.constant 32 : i32
    %242 = tpu.dynamic_rotate %235 by %c32_i32_103 dim 1 : vector<8x128xf32>, i32 -> vector<8x128xf32>
    %243 = arith.mulf %240, %228 : vector<8x128xf32>
    %244 = arith.mulf %239, %242 : vector<8x128xf32>
    %245 = arith.addf %243, %244 : vector<8x128xf32>
    %246 = math.tanh %245 : vector<8x128xf32>
    %247 = arith.mulf %241, %246 : vector<8x128xf32>
    %248 = vector.extract_strided_slice %160 {offsets = [40, 0], sizes = [8, 128], strides = [1, 1]} : vector<64x128xf32> to vector<8x128xf32>
    %249 = arith.truncf %247 : vector<8x128xf32> to vector<8x128xbf16>
    %cst_104 = arith.constant dense<0.000000e+00> : vector<8x128xf32>
    %250 = tpu.matmul %249, %156, %cst_104 {dimension_numbers = #tpu.dot_dimension_numbers<[1], [0], [0], [1], [0, 0, 1, 1], [], []>} : vector<8x128xbf16>, vector<128x128xbf16>, vector<8x128xf32> -> vector<8x128xf32>
    %251 = arith.addf %248, %250 : vector<8x128xf32>
    %252 = math.tanh %251 : vector<8x128xf32>
    %cst_105 = arith.constant 5.000000e-01 : f32
    %253 = vector.broadcast %cst_105 : f32 to vector<8x128xf32>
    %254 = arith.mulf %253, %252 : vector<8x128xf32>
    %cst_106 = arith.constant 5.000000e-01 : f32
    %255 = vector.broadcast %cst_106 : f32 to vector<8x128xf32>
    %256 = arith.addf %254, %255 : vector<8x128xf32>
    %c96_i32_107 = arith.constant 96 : i32
    %257 = tpu.dynamic_rotate %256 by %c96_i32_107 dim 1 : vector<8x128xf32>, i32 -> vector<8x128xf32>
    %c64_i32_108 = arith.constant 64 : i32
    %258 = tpu.dynamic_rotate %256 by %c64_i32_108 dim 1 : vector<8x128xf32>, i32 -> vector<8x128xf32>
    %c32_i32_109 = arith.constant 32 : i32
    %259 = tpu.dynamic_rotate %252 by %c32_i32_109 dim 1 : vector<8x128xf32>, i32 -> vector<8x128xf32>
    %260 = arith.mulf %257, %245 : vector<8x128xf32>
    %261 = arith.mulf %256, %259 : vector<8x128xf32>
    %262 = arith.addf %260, %261 : vector<8x128xf32>
    %263 = math.tanh %262 : vector<8x128xf32>
    %264 = arith.mulf %258, %263 : vector<8x128xf32>
    %265 = vector.extract_strided_slice %160 {offsets = [48, 0], sizes = [8, 128], strides = [1, 1]} : vector<64x128xf32> to vector<8x128xf32>
    %266 = arith.truncf %264 : vector<8x128xf32> to vector<8x128xbf16>
    %cst_110 = arith.constant dense<0.000000e+00> : vector<8x128xf32>
    %267 = tpu.matmul %266, %156, %cst_110 {dimension_numbers = #tpu.dot_dimension_numbers<[1], [0], [0], [1], [0, 0, 1, 1], [], []>} : vector<8x128xbf16>, vector<128x128xbf16>, vector<8x128xf32> -> vector<8x128xf32>
    %268 = arith.addf %265, %267 : vector<8x128xf32>
    %269 = math.tanh %268 : vector<8x128xf32>
    %cst_111 = arith.constant 5.000000e-01 : f32
    %270 = vector.broadcast %cst_111 : f32 to vector<8x128xf32>
    %271 = arith.mulf %270, %269 : vector<8x128xf32>
    %cst_112 = arith.constant 5.000000e-01 : f32
    %272 = vector.broadcast %cst_112 : f32 to vector<8x128xf32>
    %273 = arith.addf %271, %272 : vector<8x128xf32>
    %c96_i32_113 = arith.constant 96 : i32
    %274 = tpu.dynamic_rotate %273 by %c96_i32_113 dim 1 : vector<8x128xf32>, i32 -> vector<8x128xf32>
    %c64_i32_114 = arith.constant 64 : i32
    %275 = tpu.dynamic_rotate %273 by %c64_i32_114 dim 1 : vector<8x128xf32>, i32 -> vector<8x128xf32>
    %c32_i32_115 = arith.constant 32 : i32
    %276 = tpu.dynamic_rotate %269 by %c32_i32_115 dim 1 : vector<8x128xf32>, i32 -> vector<8x128xf32>
    %277 = arith.mulf %274, %262 : vector<8x128xf32>
    %278 = arith.mulf %273, %276 : vector<8x128xf32>
    %279 = arith.addf %277, %278 : vector<8x128xf32>
    %280 = math.tanh %279 : vector<8x128xf32>
    %281 = arith.mulf %275, %280 : vector<8x128xf32>
    %282 = vector.extract_strided_slice %160 {offsets = [56, 0], sizes = [8, 128], strides = [1, 1]} : vector<64x128xf32> to vector<8x128xf32>
    %283 = arith.truncf %281 : vector<8x128xf32> to vector<8x128xbf16>
    %cst_116 = arith.constant dense<0.000000e+00> : vector<8x128xf32>
    %284 = tpu.matmul %283, %156, %cst_116 {dimension_numbers = #tpu.dot_dimension_numbers<[1], [0], [0], [1], [0, 0, 1, 1], [], []>} : vector<8x128xbf16>, vector<128x128xbf16>, vector<8x128xf32> -> vector<8x128xf32>
    %285 = arith.addf %282, %284 : vector<8x128xf32>
    %286 = math.tanh %285 : vector<8x128xf32>
    %cst_117 = arith.constant 5.000000e-01 : f32
    %287 = vector.broadcast %cst_117 : f32 to vector<8x128xf32>
    %288 = arith.mulf %287, %286 : vector<8x128xf32>
    %cst_118 = arith.constant 5.000000e-01 : f32
    %289 = vector.broadcast %cst_118 : f32 to vector<8x128xf32>
    %290 = arith.addf %288, %289 : vector<8x128xf32>
    %c96_i32_119 = arith.constant 96 : i32
    %291 = tpu.dynamic_rotate %290 by %c96_i32_119 dim 1 : vector<8x128xf32>, i32 -> vector<8x128xf32>
    %c64_i32_120 = arith.constant 64 : i32
    %292 = tpu.dynamic_rotate %290 by %c64_i32_120 dim 1 : vector<8x128xf32>, i32 -> vector<8x128xf32>
    %c32_i32_121 = arith.constant 32 : i32
    %293 = tpu.dynamic_rotate %286 by %c32_i32_121 dim 1 : vector<8x128xf32>, i32 -> vector<8x128xf32>
    %294 = arith.mulf %291, %279 : vector<8x128xf32>
    %295 = arith.mulf %290, %293 : vector<8x128xf32>
    %296 = arith.addf %294, %295 : vector<8x128xf32>
    %297 = math.tanh %296 : vector<8x128xf32>
    %298 = arith.mulf %292, %297 : vector<8x128xf32>
    %c0_122 = arith.constant 0 : index
    %c0_123 = arith.constant 0 : index
    %299 = vector.load %arg7[%c0_122, %c0_123] : memref<1x128xf32, #tpu.memory_space<vmem>>, vector<1x128xf32>
    %c0_124 = arith.constant 0 : index
    %c0_125 = arith.constant 0 : index
    %300 = vector.load %arg8[%c0_124, %c0_125] : memref<1x128xf32, #tpu.memory_space<vmem>>, vector<1x128xf32>
    %c0_126 = arith.constant 0 : index
    %c0_127 = arith.constant 0 : index
    %301 = vector.load %arg9[%c0_126, %c0_127] : memref<1x128xf32, #tpu.memory_space<vmem>>, vector<1x128xf32>
    %c0_128 = arith.constant 0 : index
    %c0_129 = arith.constant 0 : index
    %302 = vector.load %arg10[%c0_128, %c0_129] : memref<1x128xf32, #tpu.memory_space<vmem>>, vector<1x128xf32>
    %c0_130 = arith.constant 0 : index
    %c0_131 = arith.constant 0 : index
    %303 = vector.load %arg11[%c0_130, %c0_131] : memref<128x128xbf16, #tpu.memory_space<vmem>>, vector<128x128xbf16>
    %c0_132 = arith.constant 0 : index
    %c0_133 = arith.constant 0 : index
    %304 = vector.load %arg12[%c0_132, %c0_133] : memref<1x128xf32, #tpu.memory_space<vmem>>, vector<1x128xf32>
    %c0_134 = arith.constant 0 : index
    %c0_135 = arith.constant 0 : index
    %305 = vector.load %arg13[%c0_134, %c0_135] : memref<128x128xbf16, #tpu.memory_space<vmem>>, vector<128x128xbf16>
    %c0_136 = arith.constant 0 : index
    %c0_137 = arith.constant 0 : index
    %306 = vector.load %arg14[%c0_136, %c0_137] : memref<1x128xf32, #tpu.memory_space<vmem>>, vector<1x128xf32>
    %307 = vector.broadcast %301 : vector<1x128xf32> to vector<8x128xf32>
    %308 = arith.subf %298, %307 : vector<8x128xf32>
    %cst_138 = arith.constant 9.99999974E-6 : f32
    %309 = vector.broadcast %cst_138 : f32 to vector<1x128xf32>
    %310 = arith.addf %302, %309 : vector<1x128xf32>
    %311 = math.rsqrt %310 : vector<1x128xf32>
    %312 = vector.broadcast %311 : vector<1x128xf32> to vector<8x128xf32>
    %313 = arith.mulf %308, %312 : vector<8x128xf32>
    %314 = vector.broadcast %299 : vector<1x128xf32> to vector<8x128xf32>
    %315 = arith.mulf %313, %314 : vector<8x128xf32>
    %316 = vector.broadcast %300 : vector<1x128xf32> to vector<8x128xf32>
    %317 = arith.addf %315, %316 : vector<8x128xf32>
    %318 = arith.truncf %317 : vector<8x128xf32> to vector<8x128xbf16>
    %cst_139 = arith.constant dense<0.000000e+00> : vector<8x128xf32>
    %319 = tpu.matmul %318, %303, %cst_139 {dimension_numbers = #tpu.dot_dimension_numbers<[1], [0], [0], [1], [0, 0, 1, 1], [], []>} : vector<8x128xbf16>, vector<128x128xbf16>, vector<8x128xf32> -> vector<8x128xf32>
    %320 = vector.broadcast %304 : vector<1x128xf32> to vector<8x128xf32>
    %321 = arith.addf %319, %320 : vector<8x128xf32>
    %cst_140 = arith.constant 0.000000e+00 : f32
    %322 = vector.broadcast %cst_140 : f32 to vector<8x128xf32>
    %323 = arith.maximumf %321, %322 : vector<8x128xf32>
    %324 = arith.truncf %323 : vector<8x128xf32> to vector<8x128xbf16>
    %cst_141 = arith.constant dense<0.000000e+00> : vector<8x128xf32>
    %325 = tpu.matmul %324, %305, %cst_141 {dimension_numbers = #tpu.dot_dimension_numbers<[1], [0], [0], [1], [0, 0, 1, 1], [], []>} : vector<8x128xbf16>, vector<128x128xbf16>, vector<8x128xf32> -> vector<8x128xf32>
    %326 = vector.broadcast %306 : vector<1x128xf32> to vector<8x128xf32>
    %327 = arith.addf %325, %326 : vector<8x128xf32>
    %c0_142 = arith.constant 0 : index
    %c0_143 = arith.constant 0 : index
    %328 = vector.load %arg15[%c0_142, %c0_143] : memref<8x128xf32, #tpu.memory_space<vmem>>, vector<8x128xf32>
    tpu.vector_store %arg15[%c0_142, %c0_143], %327 {strides = array<i32>} : memref<8x128xf32, #tpu.memory_space<vmem>>, vector<8x128xf32>,
    return
  }
}

</mosaic_0001>

<llo_original>
// kernel: music_genre_lstm_forward.1
$region0: #{music_genre_lstm_forward.1}
  #allocation0 [shape = 'u32[]', space=smem, size = 0x4, offset = 0x4, fixed_abs, tag = 'smem constant byte address 0x4 - core index']
  #allocation1 [shape = 'u32[144,128]{1,0:T(1,128)}', space=vmem, size = 0x12000, scoped, tag = 'internal scratch']
  #allocation2 [shape = 'f32[64,128]{1,0:T(8,128)}', space=vmem, size = 0x8000, scoped, tag = 'scratch operand']
  %s0 = inlined_call_operand.vmem [shape: bf16[64,128], index: 0, kind: input, shape index: {}]
  %s1 = inlined_call_operand.vmem [shape: bf16[128,128], index: 1, kind: input, shape index: {}]
  %s2 = inlined_call_operand.vmem [shape: bf16[128,128], index: 2, kind: input, shape index: {}]
  %s3 = inlined_call_operand.vmem [shape: f32[1,128], index: 3, kind: input, shape index: {}]
  %s4 = inlined_call_operand.hbm [shape: bf16[128,128], index: 4, kind: input, shape index: {}]
  %s5 = inlined_call_operand.hbm [shape: bf16[128,128], index: 5, kind: input, shape index: {}]
  %s6 = inlined_call_operand.vmem [shape: f32[1,128], index: 6, kind: input, shape index: {}]
  %s7 = inlined_call_operand.vmem [shape: f32[1,128], index: 7, kind: input, shape index: {}]
  %s8 = inlined_call_operand.vmem [shape: f32[1,128], index: 8, kind: input, shape index: {}]
  %s9 = inlined_call_operand.vmem [shape: f32[1,128], index: 9, kind: input, shape index: {}]
  %s10 = inlined_call_operand.vmem [shape: f32[1,128], index: 10, kind: input, shape index: {}]
  %s11 = inlined_call_operand.hbm [shape: bf16[128,128], index: 11, kind: input, shape index: {}]
  %s12 = inlined_call_operand.vmem [shape: f32[1,128], index: 12, kind: input, shape index: {}]
  %s13 = inlined_call_operand.hbm [shape: bf16[128,128], index: 13, kind: input, shape index: {}]
  %s14 = inlined_call_operand.vmem [shape: f32[1,128], index: 14, kind: input, shape index: {}]
  %s15 = inlined_call_operand.vmem [shape: f32[8,128], index: 15, kind: output, shape index: {}]
  %s16 = sld [smem:[#allocation0]]
  $region86: #{music_genre_lstm_forward.1} parent=0
    _
  %s18 = ssub.s32 1, %s16
  %s19 = scalar_select 0, %s18, %s16
  $region1: #{music_genre_lstm_forward.1} parent=0
    #allocation3 [shape = 'u8[32768]{0}', space=vmem, size = 0x8000, scoped, tag = 'input window, operand 4, single buffered']
    #allocation4 [shape = 's32[1]{0}', space=sflag, size = 0x4, scoped, tag = 'scoped memory for music_genre_lstm_forward.1']
    #allocation5 [shape = 'u8[32768]{0}', space=vmem, size = 0x8000, scoped, tag = 'input window, operand 5, single buffered']
    #allocation6 [shape = 's32[1]{0}', space=sflag, size = 0x4, scoped, tag = 'scoped memory for music_genre_lstm_forward.1']
    #allocation7 [shape = 'u8[32768]{0}', space=vmem, size = 0x8000, scoped, tag = 'input window, operand 11, single buffered']
    #allocation8 [shape = 'u8[32768]{0}', space=vmem, size = 0x8000, scoped, tag = 'input window, operand 13, single buffered']
    #allocation9 [shape = 's32[1]{0}', space=sflag, size = 0x4, scoped, tag = 'scoped memory for music_genre_lstm_forward.1']
    %20 = vsyncpa [#allocation4], 0
    %21 = vsyncpa [#allocation6], 0
    %22 = vsyncpa [#allocation9], 0
    // Predicated region
    $region2: #{music_genre_lstm_forward.1} parent=1 // pred_check
      _
    $region3: #{music_genre_lstm_forward.1} parent=1 // pred_check_branch
      %24 = sbr.rel (0) target = $region5
    $region4: #{music_genre_lstm_forward.1} parent=1 // pred_region
      _
    $region5: #{music_genre_lstm_forward.1} parent=1 // pred_fallthru
      _
    // Predicated region
    $region6: #{music_genre_lstm_forward.1} parent=1 // pred_check
      _
    $region7: #{music_genre_lstm_forward.1} parent=1 // pred_check_branch
      %26 = sbr.rel (0) target = $region9
    $region8: #{music_genre_lstm_forward.1} parent=1 // pred_region
      _
    $region9: #{music_genre_lstm_forward.1} parent=1 // pred_fallthru
      _
    // Predicated region
    $region10: #{music_genre_lstm_forward.1} parent=1 // pred_check
      _
    $region11: #{music_genre_lstm_forward.1} parent=1 // pred_check_branch
      %28 = sbr.rel (0) target = $region13
    $region12: #{music_genre_lstm_forward.1} parent=1 // pred_region
      _
    $region13: #{music_genre_lstm_forward.1} parent=1 // pred_fallthru
      _
    // Predicated region
    $region14: #{music_genre_lstm_forward.1} parent=1 // pred_check
      _
    $region15: #{music_genre_lstm_forward.1} parent=1 // pred_check_branch
      %30 = sbr.rel (0) target = $region17
    $region16: #{music_genre_lstm_forward.1} parent=1 // pred_region
      _
    $region17: #{music_genre_lstm_forward.1} parent=1 // pred_fallthru
      _
    // Predicated region
    $region18: #{music_genre_lstm_forward.1} parent=1 // pred_check
      _
    $region19: #{music_genre_lstm_forward.1} parent=1 // pred_check_branch
      %32 = sbr.rel (0) target = $region21
    $region20: #{music_genre_lstm_forward.1} parent=1 // pred_region
      %s34 = ssub.s32 1024, 1024
      %35 = vsyncadd [#allocation4], %s34
      %s36 = sshll.u32 [#allocation3], 4
      %s37 = int_to_ptr.vmem [resolvable:$true] %s36
      %42 = dma.hbm_to_vmem [thread:$0]  %s4, 1024, %s37, [#allocation4], 64, 64, 4
    $region21: #{music_genre_lstm_forward.1} parent=1 // pred_fallthru
      _
    // Predicated region
    $region22: #{music_genre_lstm_forward.1} parent=1 // pred_check
      _
    $region23: #{music_genre_lstm_forward.1} parent=1 // pred_check_branch
      %44 = sbr.rel (0) target = $region25
    $region24: #{music_genre_lstm_forward.1} parent=1 // pred_region
      %s46 = ssub.s32 1024, 1024
      %47 = vsyncadd [#allocation6], %s46
      %s48 = sshll.u32 [#allocation5], 4
      %s49 = int_to_ptr.vmem [resolvable:$true] %s48
      %54 = dma.hbm_to_vmem [thread:$0]  %s5, 1024, %s49, [#allocation6], 64, 64, 4
    $region25: #{music_genre_lstm_forward.1} parent=1 // pred_fallthru
      _
    // Predicated region
    $region26: #{music_genre_lstm_forward.1} parent=1 // pred_check
      _
    $region27: #{music_genre_lstm_forward.1} parent=1 // pred_check_branch
      %56 = sbr.rel (0) target = $region29
    $region28: #{music_genre_lstm_forward.1} parent=1 // pred_region
      _
    $region29: #{music_genre_lstm_forward.1} parent=1 // pred_fallthru
      _
    // Predicated region
    $region30: #{music_genre_lstm_forward.1} parent=1 // pred_check
      _
    $region31: #{music_genre_lstm_forward.1} parent=1 // pred_check_branch
      %58 = sbr.rel (0) target = $region33
    $region32: #{music_genre_lstm_forward.1} parent=1 // pred_region
      _
    $region33: #{music_genre_lstm_forward.1} parent=1 // pred_fallthru
      _
    // Predicated region
    $region34: #{music_genre_lstm_forward.1} parent=1 // pred_check
      _
    $region35: #{music_genre_lstm_forward.1} parent=1 // pred_check_branch
      %60 = sbr.rel (0) target = $region37
    $region36: #{music_genre_lstm_forward.1} parent=1 // pred_region
      _
    $region37: #{music_genre_lstm_forward.1} parent=1 // pred_fallthru
      _
    // Predicated region
    $region38: #{music_genre_lstm_forward.1} parent=1 // pred_check
      _
    $region39: #{music_genre_lstm_forward.1} parent=1 // pred_check_branch
      %62 = sbr.rel (0) target = $region41
    $region40: #{music_genre_lstm_forward.1} parent=1 // pred_region
      _
    $region41: #{music_genre_lstm_forward.1} parent=1 // pred_fallthru
      _
    // Predicated region
    $region42: #{music_genre_lstm_forward.1} parent=1 // pred_check
      _
    $region43: #{music_genre_lstm_forward.1} parent=1 // pred_check_branch
      %64 = sbr.rel (0) target = $region45
    $region44: #{music_genre_lstm_forward.1} parent=1 // pred_region
      _
    $region45: #{music_genre_lstm_forward.1} parent=1 // pred_fallthru
      _
    // Predicated region
    $region46: #{music_genre_lstm_forward.1} parent=1 // pred_check
      _
    $region47: #{music_genre_lstm_forward.1} parent=1 // pred_check_branch
      %66 = sbr.rel (0) target = $region49
    $region48: #{music_genre_lstm_forward.1} parent=1 // pred_region
      %s68 = ssub.s32 1024, 1024
      %69 = vsyncadd [#allocation6], %s68
      %s70 = sshll.u32 [#allocation7], 4
      %s71 = int_to_ptr.vmem [resolvable:$true] %s70
      %76 = dma.hbm_to_vmem [thread:$0]  %s11, 1024, %s71, [#allocation6], 64, 64, 4
    $region49: #{music_genre_lstm_forward.1} parent=1 // pred_fallthru
      _
    // Predicated region
    $region50: #{music_genre_lstm_forward.1} parent=1 // pred_check
      _
    $region51: #{music_genre_lstm_forward.1} parent=1 // pred_check_branch
      %78 = sbr.rel (0) target = $region53
    $region52: #{music_genre_lstm_forward.1} parent=1 // pred_region
      _
    $region53: #{music_genre_lstm_forward.1} parent=1 // pred_fallthru
      _
    // Predicated region
    $region54: #{music_genre_lstm_forward.1} parent=1 // pred_check
      _
    $region55: #{music_genre_lstm_forward.1} parent=1 // pred_check_branch
      %80 = sbr.rel (0) target = $region57
    $region56: #{music_genre_lstm_forward.1} parent=1 // pred_region
      %s82 = ssub.s32 1024, 1024
      %83 = vsyncadd [#allocation9], %s82
      %s84 = sshll.u32 [#allocation8], 4
      %s85 = int_to_ptr.vmem [resolvable:$true] %s84
      %90 = dma.hbm_to_vmem [thread:$0]  %s13, 1024, %s85, [#allocation9], 64, 64, 4
    $region57: #{music_genre_lstm_forward.1} parent=1 // pred_fallthru
      _
    // Predicated region
    $region58: #{music_genre_lstm_forward.1} parent=1 // pred_check
      _
    $region59: #{music_genre_lstm_forward.1} parent=1 // pred_check_branch
      %92 = sbr.rel (0) target = $region61
    $region60: #{music_genre_lstm_forward.1} parent=1 // pred_region
      _
    $region61: #{music_genre_lstm_forward.1} parent=1 // pred_fallthru
      _
    // Predicated region
    $region62: #{music_genre_lstm_forward.1} parent=1 // pred_check
      _
    $region63: #{music_genre_lstm_forward.1} parent=1 // pred_check_branch
      %94 = sbr.rel (0) target = $region65
    $region64: #{music_genre_lstm_forward.1} parent=1 // pred_region
      %95 = dma.done [#allocation4], 1024
    $region65: #{music_genre_lstm_forward.1} parent=1 // pred_fallthru
      _
    // Predicated region
    $region66: #{music_genre_lstm_forward.1} parent=1 // pred_check
      _
    $region67: #{music_genre_lstm_forward.1} parent=1 // pred_check_branch
      %97 = sbr.rel (0) target = $region69
    $region68: #{music_genre_lstm_forward.1} parent=1 // pred_region
      %98 = dma.done [#allocation6], 1024
    $region69: #{music_genre_lstm_forward.1} parent=1 // pred_fallthru
      _
    // Predicated region
    $region70: #{music_genre_lstm_forward.1} parent=1 // pred_check
      _
    $region71: #{music_genre_lstm_forward.1} parent=1 // pred_check_branch
      %100 = sbr.rel (0) target = $region73
    $region72: #{music_genre_lstm_forward.1} parent=1 // pred_region
      %101 = dma.done [#allocation6], 1024
    $region73: #{music_genre_lstm_forward.1} parent=1 // pred_fallthru
      _
    // Predicated region
    $region74: #{music_genre_lstm_forward.1} parent=1 // pred_check
      _
    $region75: #{music_genre_lstm_forward.1} parent=1 // pred_check_branch
      %103 = sbr.rel (0) target = $region77
    $region76: #{music_genre_lstm_forward.1} parent=1 // pred_region
      %104 = dma.done [#allocation9], 1024
    $region77: #{music_genre_lstm_forward.1} parent=1 // pred_fallthru
      _
    %v106 = vld [vmem:[%s0] sm:$0xf]
    %v107 = vld [vmem:[%s0 + $0x4] sm:$0xf]
    %v108 = vld [vmem:[%s0 + $0x8] sm:$0xf]
    %v109 = vld [vmem:[%s0 + $0xc] sm:$0xf]
    %v110 = vld [vmem:[%s0 + $0x10] sm:$0xf]
    %v111 = vld [vmem:[%s0 + $0x14] sm:$0xf]
    %v112 = vld [vmem:[%s0 + $0x18] sm:$0xf]
    %v113 = vld [vmem:[%s0 + $0x1c] sm:$0xf]
    %v114 = vld [vmem:[%s1] sm:$0xf]
    %v115 = vld [vmem:[%s1 + $0x4] sm:$0xf]
    %v116 = vld [vmem:[%s1 + $0x8] sm:$0xf]
    %v117 = vld [vmem:[%s1 + $0xc] sm:$0xf]
    %v118 = vld [vmem:[%s1 + $0x10] sm:$0xf]
    %v119 = vld [vmem:[%s1 + $0x14] sm:$0xf]
    %v120 = vld [vmem:[%s1 + $0x18] sm:$0xf]
    %v121 = vld [vmem:[%s1 + $0x1c] sm:$0xf]
    %v122 = vld [vmem:[%s1 + $0x20] sm:$0xf]
    %v123 = vld [vmem:[%s1 + $0x24] sm:$0xf]
    %v124 = vld [vmem:[%s1 + $0x28] sm:$0xf]
    %v125 = vld [vmem:[%s1 + $0x2c] sm:$0xf]
    %v126 = vld [vmem:[%s1 + $0x30] sm:$0xf]
    %v127 = vld [vmem:[%s1 + $0x34] sm:$0xf]
    %v128 = vld [vmem:[%s1 + $0x38] sm:$0xf]
    %v129 = vld [vmem:[%s1 + $0x3c] sm:$0xf]
    %v130 = vld [vmem:[%s2] sm:$0xf]
    %v131 = vld [vmem:[%s2 + $0x4] sm:$0xf]
    %v132 = vld [vmem:[%s2 + $0x8] sm:$0xf]
    %v133 = vld [vmem:[%s2 + $0xc] sm:$0xf]
    %v134 = vld [vmem:[%s2 + $0x10] sm:$0xf]
    %v135 = vld [vmem:[%s2 + $0x14] sm:$0xf]
    %v136 = vld [vmem:[%s2 + $0x18] sm:$0xf]
    %v137 = vld [vmem:[%s2 + $0x1c] sm:$0xf]
    %v138 = vld [vmem:[%s2 + $0x20] sm:$0xf]
    %v139 = vld [vmem:[%s2 + $0x24] sm:$0xf]
    %v140 = vld [vmem:[%s2 + $0x28] sm:$0xf]
    %v141 = vld [vmem:[%s2 + $0x2c] sm:$0xf]
    %v142 = vld [vmem:[%s2 + $0x30] sm:$0xf]
    %v143 = vld [vmem:[%s2 + $0x34] sm:$0xf]
    %v144 = vld [vmem:[%s2 + $0x38] sm:$0xf]
    %v145 = vld [vmem:[%s2 + $0x3c] sm:$0xf]
    %v146 = vld [vmem:[%s3] sm:$0x1]
    %v148 = vlaneseq
    %v149 = vshrl.u32 %v148, 7
    %v150 = vsub.s32 0, %v149
    %v151 = vrot.slane %v146, %v150
    %v161 = vunpack.c.l.b16 %v106
    %v162 = vunpack.c.l.b16 %v107
    %v163 = vunpack.c.l.b16 %v108
    %v164 = vunpack.c.l.b16 %v109
    %v165 = vunpack.c.l.b16 %v110
    %v166 = vunpack.c.l.b16 %v111
    %v167 = vunpack.c.l.b16 %v112
    %v168 = vunpack.c.l.b16 %v113
    %v169 = vpack.c.b16 %v162, %v161
    %v170 = vpack.c.b16 %v164, %v163
    %v171 = vpack.c.b16 %v166, %v165
    %v172 = vpack.c.b16 %v168, %v167
    %v193 = vunpack.c.l.b16 %v114
    %v194 = vunpack.c.l.b16 %v115
    %v195 = vunpack.c.l.b16 %v116
    %v196 = vunpack.c.l.b16 %v117
    %v197 = vunpack.c.l.b16 %v118
    %v198 = vunpack.c.l.b16 %v119
    %v199 = vunpack.c.l.b16 %v120
    %v200 = vunpack.c.l.b16 %v121
    %v201 = vunpack.c.l.b16 %v122
    %v202 = vunpack.c.l.b16 %v123
    %v203 = vunpack.c.l.b16 %v124
    %v204 = vunpack.c.l.b16 %v125
    %v205 = vunpack.c.l.b16 %v126
    %v206 = vunpack.c.l.b16 %v127
    %v207 = vunpack.c.l.b16 %v128
    %v208 = vunpack.c.l.b16 %v129
    %v209 = vpack.c.b16 %v194, %v193
    %v210 = vpack.c.b16 %v196, %v195
    %v211 = vpack.c.b16 %v198, %v197
    %v212 = vpack.c.b16 %v200, %v199
    %v213 = vpack.c.b16 %v202, %v201
    %v214 = vpack.c.b16 %v204, %v203
    %v215 = vpack.c.b16 %v206, %v205
    %v216 = vpack.c.b16 %v208, %v207
    %225 = vmatprep.subr.bf16.mxu0 0
    %226 = vmatpush1.bf16.msra.mxu0 %v216
    %227 = vmatprep.subr.bf16.mxu0 0
    %228 = vmatpush1.bf16.msra.mxu0 %v215
    %229 = vmatprep.subr.bf16.mxu0 0
    %230 = vmatpush1.bf16.msra.mxu0 %v214
    %231 = vmatprep.subr.bf16.mxu0 0
    %232 = vmatpush1.bf16.msra.mxu0 %v213
    %233 = vmatprep.subr.bf16.mxu0 0
    %234 = vmatpush1.bf16.msra.mxu0 %v212
    %235 = vmatprep.subr.bf16.mxu0 0
    %236 = vmatpush1.bf16.msra.mxu0 %v211
    %237 = vmatprep.subr.bf16.mxu0 0
    %238 = vmatpush1.bf16.msra.mxu0 %v210
    %239 = vmatprep.subr.bf16.mxu0 0
    %240 = vmatpush1.bf16.msra.mxu0 %v209
    %241 = vmatprep.subr.bf16.mxu0 0
    %242 = vmatpush2.bf16.msra.mxu0 0
    %243 = vmatprep.subr.bf16.mxu0 0
    %244 = vmatpush2.bf16.msra.mxu0 0
    %245 = vmatprep.subr.bf16.mxu0 0
    %246 = vmatpush2.bf16.msra.mxu0 0
    %247 = vmatprep.subr.bf16.mxu0 0
    %248 = vmatpush2.bf16.msra.mxu0 0
    %249 = vmatprep.subr.bf16.mxu0 0
    %250 = vmatpush2.bf16.msra.mxu0 0
    %251 = vmatprep.subr.bf16.mxu0 0
    %252 = vmatpush2.bf16.msra.mxu0 0
    %253 = vmatprep.subr.bf16.mxu0 0
    %254 = vmatpush2.bf16.msra.mxu0 0
    %255 = vmatprep.subr.bf16.mxu0 0
    %256 = vmatpush2.bf16.msra.mxu0 0
    %257 = vmatprep.mubr.bf16.mxu0 0
    %258 = vmatmul.mubr.bf16.gmra.mxu0 %v169
    %v259 = vpop.f32.mrf.mxu0
    %v260 = vadd.f32 %v151, %v259
    %v261 = vpop.f32.mrf.mxu0
    %v262 = vpop.f32.mrf.mxu0
    %v263 = vadd.f32 %v151, %v262
    %v264 = vpop.f32.mrf.mxu0
    %265 = vmatprep.mubr.bf16.mxu0 0
    %266 = vmatmul.mubr.bf16.gmra.mxu0 %v170
    %v267 = vpop.f32.mrf.mxu0
    %v268 = vadd.f32 %v151, %v267
    %v269 = vpop.f32.mrf.mxu0
    %v270 = vpop.f32.mrf.mxu0
    %v271 = vadd.f32 %v151, %v270
    %v272 = vpop.f32.mrf.mxu0
    %273 = vmatprep.mubr.bf16.mxu0 0
    %274 = vmatmul.mubr.bf16.gmra.mxu0 %v171
    %v275 = vpop.f32.mrf.mxu0
    %v276 = vadd.f32 %v151, %v275
    %v277 = vpop.f32.mrf.mxu0
    %v278 = vpop.f32.mrf.mxu0
    %v279 = vadd.f32 %v151, %v278
    %v280 = vpop.f32.mrf.mxu0
    %281 = vmatprep.mubr.bf16.mxu0 0
    %282 = vmatmul.mubr.bf16.gmra.mxu0 %v172
    %v283 = vpop.f32.mrf.mxu0
    %v284 = vadd.f32 %v151, %v283
    %v285 = vpop.f32.mrf.mxu0
    %v286 = vpop.f32.mrf.mxu0
    %v287 = vadd.f32 %v151, %v286
    %v288 = vpop.f32.mrf.mxu0
    %289 = vdwg.mxu0
    %v306 = vunpack.c.l.b16 %v130
    %v307 = vunpack.c.l.b16 %v131
    %v308 = vunpack.c.l.b16 %v132
    %v309 = vunpack.c.l.b16 %v133
    %v310 = vunpack.c.l.b16 %v134
    %v311 = vunpack.c.l.b16 %v135
    %v312 = vunpack.c.l.b16 %v136
    %v313 = vunpack.c.l.b16 %v137
    %v314 = vunpack.c.l.b16 %v138
    %v315 = vunpack.c.l.b16 %v139
    %v316 = vunpack.c.l.b16 %v140
    %v317 = vunpack.c.l.b16 %v141
    %v318 = vunpack.c.l.b16 %v142
    %v319 = vunpack.c.l.b16 %v143
    %v320 = vunpack.c.l.b16 %v144
    %v321 = vunpack.c.l.b16 %v145
    %v322 = vpack.c.b16 %v307, %v306
    %v323 = vpack.c.b16 %v309, %v308
    %v324 = vpack.c.b16 %v311, %v310
    %v325 = vpack.c.b16 %v313, %v312
    %v326 = vpack.c.b16 %v315, %v314
    %v327 = vpack.c.b16 %v317, %v316
    %v328 = vpack.c.b16 %v319, %v318
    %v329 = vpack.c.b16 %v321, %v320
    %338 = vmatprep.subr.bf16.mxu0 0
    %339 = vmatpush1.bf16.msra.mxu0 %v329
    %340 = vmatprep.subr.bf16.mxu0 0
    %341 = vmatpush1.bf16.msra.mxu0 %v328
    %342 = vmatprep.subr.bf16.mxu0 0
    %343 = vmatpush1.bf16.msra.mxu0 %v327
    %344 = vmatprep.subr.bf16.mxu0 0
    %345 = vmatpush1.bf16.msra.mxu0 %v326
    %346 = vmatprep.subr.bf16.mxu0 0
    %347 = vmatpush1.bf16.msra.mxu0 %v325
    %348 = vmatprep.subr.bf16.mxu0 0
    %349 = vmatpush1.bf16.msra.mxu0 %v324
    %350 = vmatprep.subr.bf16.mxu0 0
    %351 = vmatpush1.bf16.msra.mxu0 %v323
    %352 = vmatprep.subr.bf16.mxu0 0
    %353 = vmatpush1.bf16.msra.mxu0 %v322
    %354 = vmatprep.subr.bf16.mxu0 0
    %355 = vmatpush2.bf16.msra.mxu0 0
    %356 = vmatprep.subr.bf16.mxu0 0
    %357 = vmatpush2.bf16.msra.mxu0 0
    %358 = vmatprep.subr.bf16.mxu0 0
    %359 = vmatpush2.bf16.msra.mxu0 0
    %360 = vmatprep.subr.bf16.mxu0 0
    %361 = vmatpush2.bf16.msra.mxu0 0
    %362 = vmatprep.subr.bf16.mxu0 0
    %363 = vmatpush2.bf16.msra.mxu0 0
    %364 = vmatprep.subr.bf16.mxu0 0
    %365 = vmatpush2.bf16.msra.mxu0 0
    %366 = vmatprep.subr.bf16.mxu0 0
    %367 = vmatpush2.bf16.msra.mxu0 0
    %368 = vmatprep.subr.bf16.mxu0 0
    %369 = vmatpush2.bf16.msra.mxu0 0
    %370 = vmatprep.mubr.bf16.mxu0 0
    %371 = vmatmul.mubr.bf16.gmra.mxu0 0
    %v372 = vpop.f32.mrf.mxu0
    %v373 = vadd.f32 0.0, %v372
    %v374 = vpop.f32.mrf.mxu0
    %v375 = vpop.f32.mrf.mxu0
    %v376 = vpop.f32.mrf.mxu0
    %377 = vdwg.mxu0
    %v378 = vadd.f32 %v260, %v373
    %v379 = vtanh.pop %v378
    %v380 = vmul.f32 %v379, 0.5
    %v381 = vadd.f32 %v380, 0.5
    %382 = vrot.lane.b32.xlu0 %v381, 96
    %v383 = vpop.permute.xlu0 %382
    %384 = vrot.lane.b32.xlu0 %v381, 64
    %v385 = vpop.permute.xlu0 %384
    %386 = vrot.lane.b32.xlu0 %v379, 32
    %v387 = vpop.permute.xlu0 %386
    %v388 = vmul.f32 %v383, 0.0
    %v389 = vmul.f32 %v381, %v387
    %v390 = vadd.f32 %v388, %v389
    %v391 = vtanh.pop %v390
    %v392 = vmul.f32 %v385, %v391
    %393 = vst [vmem:[#allocation2] sm:$0xff] %v392
    %v394 = vpack.c.bf16 %v392, %v392
    %395 = vmatprep.subr.bf16.mxu0 0
    %396 = vmatpush1.bf16.msra.mxu0 %v329
    %397 = vmatprep.subr.bf16.mxu0 0
    %398 = vmatpush1.bf16.msra.mxu0 %v328
    %399 = vmatprep.subr.bf16.mxu0 0
    %400 = vmatpush1.bf16.msra.mxu0 %v327
    %401 = vmatprep.subr.bf16.mxu0 0
    %402 = vmatpush1.bf16.msra.mxu0 %v326
    %403 = vmatprep.subr.bf16.mxu0 0
    %404 = vmatpush1.bf16.msra.mxu0 %v325
    %405 = vmatprep.subr.bf16.mxu0 0
    %406 = vmatpush1.bf16.msra.mxu0 %v324
    %407 = vmatprep.subr.bf16.mxu0 0
    %408 = vmatpush1.bf16.msra.mxu0 %v323
    %409 = vmatprep.subr.bf16.mxu0 0
    %410 = vmatpush1.bf16.msra.mxu0 %v322
    %411 = vmatprep.subr.bf16.mxu0 0
    %412 = vmatpush2.bf16.msra.mxu0 0
    %413 = vmatprep.subr.bf16.mxu0 0
    %414 = vmatpush2.bf16.msra.mxu0 0
    %415 = vmatprep.subr.bf16.mxu0 0
    %416 = vmatpush2.bf16.msra.mxu0 0
    %417 = vmatprep.subr.bf16.mxu0 0
    %418 = vmatpush2.bf16.msra.mxu0 0
    %419 = vmatprep.subr.bf16.mxu0 0
    %420 = vmatpush2.bf16.msra.mxu0 0
    %421 = vmatprep.subr.bf16.mxu0 0
    %422 = vmatpush2.bf16.msra.mxu0 0
    %423 = vmatprep.subr.bf16.mxu0 0
    %424 = vmatpush2.bf16.msra.mxu0 0
    %425 = vmatprep.subr.bf16.mxu0 0
    %426 = vmatpush2.bf16.msra.mxu0 0
    %427 = vmatprep.mubr.bf16.mxu0 0
    %428 = vmatmul.mubr.bf16.gmra.mxu0 %v394
    %v429 = vpop.f32.mrf.mxu0
    %v430 = vadd.f32 0.0, %v429
    %v431 = vpop.f32.mrf.mxu0
    %v432 = vpop.f32.mrf.mxu0
    %v433 = vpop.f32.mrf.mxu0
    %434 = vdwg.mxu0
    %v435 = vadd.f32 %v263, %v430
    %v436 = vtanh.pop %v435
    %v437 = vmul.f32 %v436, 0.5
    %v438 = vadd.f32 %v437, 0.5
    %439 = vrot.lane.b32.xlu0 %v438, 96
    %v440 = vpop.permute.xlu0 %439
    %441 = vrot.lane.b32.xlu0 %v438, 64
    %v442 = vpop.permute.xlu0 %441
    %443 = vrot.lane.b32.xlu0 %v436, 32
    %v444 = vpop.permute.xlu0 %443
    %v445 = vmul.f32 %v440, %v390
    %v446 = vmul.f32 %v438, %v444
    %v447 = vadd.f32 %v445, %v446
    %v448 = vtanh.pop %v447
    %v449 = vmul.f32 %v442, %v448
    %450 = vst [vmem:[#allocation2 + $0x8] sm:$0xff] %v449
    %v451 = vpack.c.bf16 %v449, %v449
    %452 = vmatprep.subr.bf16.mxu0 0
    %453 = vmatpush1.bf16.msra.mxu0 %v329
    %454 = vmatprep.subr.bf16.mxu0 0
    %455 = vmatpush1.bf16.msra.mxu0 %v328
    %456 = vmatprep.subr.bf16.mxu0 0
    %457 = vmatpush1.bf16.msra.mxu0 %v327
    %458 = vmatprep.subr.bf16.mxu0 0
    %459 = vmatpush1.bf16.msra.mxu0 %v326
    %460 = vmatprep.subr.bf16.mxu0 0
    %461 = vmatpush1.bf16.msra.mxu0 %v325
    %462 = vmatprep.subr.bf16.mxu0 0
    %463 = vmatpush1.bf16.msra.mxu0 %v324
    %464 = vmatprep.subr.bf16.mxu0 0
    %465 = vmatpush1.bf16.msra.mxu0 %v323
    %466 = vmatprep.subr.bf16.mxu0 0
    %467 = vmatpush1.bf16.msra.mxu0 %v322
    %468 = vmatprep.subr.bf16.mxu0 0
    %469 = vmatpush2.bf16.msra.mxu0 0
    %470 = vmatprep.subr.bf16.mxu0 0
    %471 = vmatpush2.bf16.msra.mxu0 0
    %472 = vmatprep.subr.bf16.mxu0 0
    %473 = vmatpush2.bf16.msra.mxu0 0
    %474 = vmatprep.subr.bf16.mxu0 0
    %475 = vmatpush2.bf16.msra.mxu0 0
    %476 = vmatprep.subr.bf16.mxu0 0
    %477 = vmatpush2.bf16.msra.mxu0 0
    %478 = vmatprep.subr.bf16.mxu0 0
    %479 = vmatpush2.bf16.msra.mxu0 0
    %480 = vmatprep.subr.bf16.mxu0 0
    %481 = vmatpush2.bf16.msra.mxu0 0
    %482 = vmatprep.subr.bf16.mxu0 0
    %483 = vmatpush2.bf16.msra.mxu0 0
    %484 = vmatprep.mubr.bf16.mxu0 0
    %485 = vmatmul.mubr.bf16.gmra.mxu0 %v451
    %v486 = vpop.f32.mrf.mxu0
    %v487 = vadd.f32 0.0, %v486
    %v488 = vpop.f32.mrf.mxu0
    %v489 = vpop.f32.mrf.mxu0
    %v490 = vpop.f32.mrf.mxu0
    %491 = vdwg.mxu0
    %v492 = vadd.f32 %v268, %v487
    %v493 = vtanh.pop %v492
    %v494 = vmul.f32 %v493, 0.5
    %v495 = vadd.f32 %v494, 0.5
    %496 = vrot.lane.b32.xlu0 %v495, 96
    %v497 = vpop.permute.xlu0 %496
    %498 = vrot.lane.b32.xlu0 %v495, 64
    %v499 = vpop.permute.xlu0 %498
    %500 = vrot.lane.b32.xlu0 %v493, 32
    %v501 = vpop.permute.xlu0 %500
    %v502 = vmul.f32 %v497, %v447
    %v503 = vmul.f32 %v495, %v501
    %v504 = vadd.f32 %v502, %v503
    %v505 = vtanh.pop %v504
    %v506 = vmul.f32 %v499, %v505
    %507 = vst [vmem:[#allocation2 + $0x10] sm:$0xff] %v506
    %v508 = vpack.c.bf16 %v506, %v506
    %509 = vmatprep.subr.bf16.mxu0 0
    %510 = vmatpush1.bf16.msra.mxu0 %v329
    %511 = vmatprep.subr.bf16.mxu0 0
    %512 = vmatpush1.bf16.msra.mxu0 %v328
    %513 = vmatprep.subr.bf16.mxu0 0
    %514 = vmatpush1.bf16.msra.mxu0 %v327
    %515 = vmatprep.subr.bf16.mxu0 0
    %516 = vmatpush1.bf16.msra.mxu0 %v326
    %517 = vmatprep.subr.bf16.mxu0 0
    %518 = vmatpush1.bf16.msra.mxu0 %v325
    %519 = vmatprep.subr.bf16.mxu0 0
    %520 = vmatpush1.bf16.msra.mxu0 %v324
    %521 = vmatprep.subr.bf16.mxu0 0
    %522 = vmatpush1.bf16.msra.mxu0 %v323
    %523 = vmatprep.subr.bf16.mxu0 0
    %524 = vmatpush1.bf16.msra.mxu0 %v322
    %525 = vmatprep.subr.bf16.mxu0 0
    %526 = vmatpush2.bf16.msra.mxu0 0
    %527 = vmatprep.subr.bf16.mxu0 0
    %528 = vmatpush2.bf16.msra.mxu0 0
    %529 = vmatprep.subr.bf16.mxu0 0
    %530 = vmatpush2.bf16.msra.mxu0 0
    %531 = vmatprep.subr.bf16.mxu0 0
    %532 = vmatpush2.bf16.msra.mxu0 0
    %533 = vmatprep.subr.bf16.mxu0 0
    %534 = vmatpush2.bf16.msra.mxu0 0
    %535 = vmatprep.subr.bf16.mxu0 0
    %536 = vmatpush2.bf16.msra.mxu0 0
    %537 = vmatprep.subr.bf16.mxu0 0
    %538 = vmatpush2.bf16.msra.mxu0 0
    %539 = vmatprep.subr.bf16.mxu0 0
    %540 = vmatpush2.bf16.msra.mxu0 0
    %541 = vmatprep.mubr.bf16.mxu0 0
    %542 = vmatmul.mubr.bf16.gmra.mxu0 %v508
    %v543 = vpop.f32.mrf.mxu0
    %v544 = vadd.f32 0.0, %v543
    %v545 = vpop.f32.mrf.mxu0
    %v546 = vpop.f32.mrf.mxu0
    %v547 = vpop.f32.mrf.mxu0
    %548 = vdwg.mxu0
    %v549 = vadd.f32 %v271, %v544
    %v550 = vtanh.pop %v549
    %v551 = vmul.f32 %v550, 0.5
    %v552 = vadd.f32 %v551, 0.5
    %553 = vrot.lane.b32.xlu0 %v552, 96
    %v554 = vpop.permute.xlu0 %553
    %555 = vrot.lane.b32.xlu0 %v552, 64
    %v556 = vpop.permute.xlu0 %555
    %557 = vrot.lane.b32.xlu0 %v550, 32
    %v558 = vpop.permute.xlu0 %557
    %v559 = vmul.f32 %v554, %v504
    %v560 = vmul.f32 %v552, %v558
    %v561 = vadd.f32 %v559, %v560
    %v562 = vtanh.pop %v561
    %v563 = vmul.f32 %v556, %v562
    %564 = vst [vmem:[#allocation2 + $0x18] sm:$0xff] %v563
    %v565 = vpack.c.bf16 %v563, %v563
    %566 = vmatprep.subr.bf16.mxu0 0
    %567 = vmatpush1.bf16.msra.mxu0 %v329
    %568 = vmatprep.subr.bf16.mxu0 0
    %569 = vmatpush1.bf16.msra.mxu0 %v328
    %570 = vmatprep.subr.bf16.mxu0 0
    %571 = vmatpush1.bf16.msra.mxu0 %v327
    %572 = vmatprep.subr.bf16.mxu0 0
    %573 = vmatpush1.bf16.msra.mxu0 %v326
    %574 = vmatprep.subr.bf16.mxu0 0
    %575 = vmatpush1.bf16.msra.mxu0 %v325
    %576 = vmatprep.subr.bf16.mxu0 0
    %577 = vmatpush1.bf16.msra.mxu0 %v324
    %578 = vmatprep.subr.bf16.mxu0 0
    %579 = vmatpush1.bf16.msra.mxu0 %v323
    %580 = vmatprep.subr.bf16.mxu0 0
    %581 = vmatpush1.bf16.msra.mxu0 %v322
    %582 = vmatprep.subr.bf16.mxu0 0
    %583 = vmatpush2.bf16.msra.mxu0 0
    %584 = vmatprep.subr.bf16.mxu0 0
    %585 = vmatpush2.bf16.msra.mxu0 0
    %586 = vmatprep.subr.bf16.mxu0 0
    %587 = vmatpush2.bf16.msra.mxu0 0
    %588 = vmatprep.subr.bf16.mxu0 0
    %589 = vmatpush2.bf16.msra.mxu0 0
    %590 = vmatprep.subr.bf16.mxu0 0
    %591 = vmatpush2.bf16.msra.mxu0 0
    %592 = vmatprep.subr.bf16.mxu0 0
    %593 = vmatpush2.bf16.msra.mxu0 0
    %594 = vmatprep.subr.bf16.mxu0 0
    %595 = vmatpush2.bf16.msra.mxu0 0
    %596 = vmatprep.subr.bf16.mxu0 0
    %597 = vmatpush2.bf16.msra.mxu0 0
    %598 = vmatprep.mubr.bf16.mxu0 0
    %599 = vmatmul.mubr.bf16.gmra.mxu0 %v565
    %v600 = vpop.f32.mrf.mxu0
    %v601 = vadd.f32 0.0, %v600
    %v602 = vpop.f32.mrf.mxu0
    %v603 = vpop.f32.mrf.mxu0
    %v604 = vpop.f32.mrf.mxu0
    %605 = vdwg.mxu0
    %v606 = vadd.f32 %v276, %v601
    %v607 = vtanh.pop %v606
    %v608 = vmul.f32 %v607, 0.5
    %v609 = vadd.f32 %v608, 0.5
    %610 = vrot.lane.b32.xlu0 %v609, 96
    %v611 = vpop.permute.xlu0 %610
    %612 = vrot.lane.b32.xlu0 %v609, 64
    %v613 = vpop.permute.xlu0 %612
    %614 = vrot.lane.b32.xlu0 %v607, 32
    %v615 = vpop.permute.xlu0 %614
    %v616 = vmul.f32 %v611, %v561
    %v617 = vmul.f32 %v609, %v615
    %v618 = vadd.f32 %v616, %v617
    %v619 = vtanh.pop %v618
    %v620 = vmul.f32 %v613, %v619
    %621 = vst [vmem:[#allocation2 + $0x20] sm:$0xff] %v620
    %v622 = vpack.c.bf16 %v620, %v620
    %623 = vmatprep.subr.bf16.mxu0 0
    %624 = vmatpush1.bf16.msra.mxu0 %v329
    %625 = vmatprep.subr.bf16.mxu0 0
    %626 = vmatpush1.bf16.msra.mxu0 %v328
    %627 = vmatprep.subr.bf16.mxu0 0
    %628 = vmatpush1.bf16.msra.mxu0 %v327
    %629 = vmatprep.subr.bf16.mxu0 0
    %630 = vmatpush1.bf16.msra.mxu0 %v326
    %631 = vmatprep.subr.bf16.mxu0 0
    %632 = vmatpush1.bf16.msra.mxu0 %v325
    %633 = vmatprep.subr.bf16.mxu0 0
    %634 = vmatpush1.bf16.msra.mxu0 %v324
    %635 = vmatprep.subr.bf16.mxu0 0
    %636 = vmatpush1.bf16.msra.mxu0 %v323
    %637 = vmatprep.subr.bf16.mxu0 0
    %638 = vmatpush1.bf16.msra.mxu0 %v322
    %639 = vmatprep.subr.bf16.mxu0 0
    %640 = vmatpush2.bf16.msra.mxu0 0
    %641 = vmatprep.subr.bf16.mxu0 0
    %642 = vmatpush2.bf16.msra.mxu0 0
    %643 = vmatprep.subr.bf16.mxu0 0
    %644 = vmatpush2.bf16.msra.mxu0 0
    %645 = vmatprep.subr.bf16.mxu0 0
    %646 = vmatpush2.bf16.msra.mxu0 0
    %647 = vmatprep.subr.bf16.mxu0 0
    %648 = vmatpush2.bf16.msra.mxu0 0
    %649 = vmatprep.subr.bf16.mxu0 0
    %650 = vmatpush2.bf16.msra.mxu0 0
    %651 = vmatprep.subr.bf16.mxu0 0
    %652 = vmatpush2.bf16.msra.mxu0 0
    %653 = vmatprep.subr.bf16.mxu0 0
    %654 = vmatpush2.bf16.msra.mxu0 0
    %655 = vmatprep.mubr.bf16.mxu0 0
    %656 = vmatmul.mubr.bf16.gmra.mxu0 %v622
    %v657 = vpop.f32.mrf.mxu0
    %v658 = vadd.f32 0.0, %v657
    %v659 = vpop.f32.mrf.mxu0
    %v660 = vpop.f32.mrf.mxu0
    %v661 = vpop.f32.mrf.mxu0
    %662 = vdwg.mxu0
    %v663 = vadd.f32 %v279, %v658
    %v664 = vtanh.pop %v663
    %v665 = vmul.f32 %v664, 0.5
    %v666 = vadd.f32 %v665, 0.5
    %667 = vrot.lane.b32.xlu0 %v666, 96
    %v668 = vpop.permute.xlu0 %667
    %669 = vrot.lane.b32.xlu0 %v666, 64
    %v670 = vpop.permute.xlu0 %669
    %671 = vrot.lane.b32.xlu0 %v664, 32
    %v672 = vpop.permute.xlu0 %671
    %v673 = vmul.f32 %v668, %v618
    %v674 = vmul.f32 %v666, %v672
    %v675 = vadd.f32 %v673, %v674
    %v676 = vtanh.pop %v675
    %v677 = vmul.f32 %v670, %v676
    %678 = vst [vmem:[#allocation2 + $0x28] sm:$0xff] %v677
    %v679 = vpack.c.bf16 %v677, %v677
    %680 = vmatprep.subr.bf16.mxu0 0
    %681 = vmatpush1.bf16.msra.mxu0 %v329
    %682 = vmatprep.subr.bf16.mxu0 0
    %683 = vmatpush1.bf16.msra.mxu0 %v328
    %684 = vmatprep.subr.bf16.mxu0 0
    %685 = vmatpush1.bf16.msra.mxu0 %v327
    %686 = vmatprep.subr.bf16.mxu0 0
    %687 = vmatpush1.bf16.msra.mxu0 %v326
    %688 = vmatprep.subr.bf16.mxu0 0
    %689 = vmatpush1.bf16.msra.mxu0 %v325
    %690 = vmatprep.subr.bf16.mxu0 0
    %691 = vmatpush1.bf16.msra.mxu0 %v324
    %692 = vmatprep.subr.bf16.mxu0 0
    %693 = vmatpush1.bf16.msra.mxu0 %v323
    %694 = vmatprep.subr.bf16.mxu0 0
    %695 = vmatpush1.bf16.msra.mxu0 %v322
    %696 = vmatprep.subr.bf16.mxu0 0
    %697 = vmatpush2.bf16.msra.mxu0 0
    %698 = vmatprep.subr.bf16.mxu0 0
    %699 = vmatpush2.bf16.msra.mxu0 0
    %700 = vmatprep.subr.bf16.mxu0 0
    %701 = vmatpush2.bf16.msra.mxu0 0
    %702 = vmatprep.subr.bf16.mxu0 0
    %703 = vmatpush2.bf16.msra.mxu0 0
    %704 = vmatprep.subr.bf16.mxu0 0
    %705 = vmatpush2.bf16.msra.mxu0 0
    %706 = vmatprep.subr.bf16.mxu0 0
    %707 = vmatpush2.bf16.msra.mxu0 0
    %708 = vmatprep.subr.bf16.mxu0 0
    %709 = vmatpush2.bf16.msra.mxu0 0
    %710 = vmatprep.subr.bf16.mxu0 0
    %711 = vmatpush2.bf16.msra.mxu0 0
    %712 = vmatprep.mubr.bf16.mxu0 0
    %713 = vmatmul.mubr.bf16.gmra.mxu0 %v679
    %v714 = vpop.f32.mrf.mxu0
    %v715 = vadd.f32 0.0, %v714
    %v716 = vpop.f32.mrf.mxu0
    %v717 = vpop.f32.mrf.mxu0
    %v718 = vpop.f32.mrf.mxu0
    %719 = vdwg.mxu0
    %v720 = vadd.f32 %v284, %v715
    %v721 = vtanh.pop %v720
    %v722 = vmul.f32 %v721, 0.5
    %v723 = vadd.f32 %v722, 0.5
    %724 = vrot.lane.b32.xlu0 %v723, 96
    %v725 = vpop.permute.xlu0 %724
    %726 = vrot.lane.b32.xlu0 %v723, 64
    %v727 = vpop.permute.xlu0 %726
    %728 = vrot.lane.b32.xlu0 %v721, 32
    %v729 = vpop.permute.xlu0 %728
    %v730 = vmul.f32 %v725, %v675
    %v731 = vmul.f32 %v723, %v729
    %v732 = vadd.f32 %v730, %v731
    %v733 = vtanh.pop %v732
    %v734 = vmul.f32 %v727, %v733
    %735 = vst [vmem:[#allocation2 + $0x30] sm:$0xff] %v734
    %v736 = vpack.c.bf16 %v734, %v734
    %737 = vmatprep.subr.bf16.mxu0 0
    %738 = vmatpush1.bf16.msra.mxu0 %v329
    %739 = vmatprep.subr.bf16.mxu0 0
    %740 = vmatpush1.bf16.msra.mxu0 %v328
    %741 = vmatprep.subr.bf16.mxu0 0
    %742 = vmatpush1.bf16.msra.mxu0 %v327
    %743 = vmatprep.subr.bf16.mxu0 0
    %744 = vmatpush1.bf16.msra.mxu0 %v326
    %745 = vmatprep.subr.bf16.mxu0 0
    %746 = vmatpush1.bf16.msra.mxu0 %v325
    %747 = vmatprep.subr.bf16.mxu0 0
    %748 = vmatpush1.bf16.msra.mxu0 %v324
    %749 = vmatprep.subr.bf16.mxu0 0
    %750 = vmatpush1.bf16.msra.mxu0 %v323
    %751 = vmatprep.subr.bf16.mxu0 0
    %752 = vmatpush1.bf16.msra.mxu0 %v322
    %753 = vmatprep.subr.bf16.mxu0 0
    %754 = vmatpush2.bf16.msra.mxu0 0
    %755 = vmatprep.subr.bf16.mxu0 0
    %756 = vmatpush2.bf16.msra.mxu0 0
    %757 = vmatprep.subr.bf16.mxu0 0
    %758 = vmatpush2.bf16.msra.mxu0 0
    %759 = vmatprep.subr.bf16.mxu0 0
    %760 = vmatpush2.bf16.msra.mxu0 0
    %761 = vmatprep.subr.bf16.mxu0 0
    %762 = vmatpush2.bf16.msra.mxu0 0
    %763 = vmatprep.subr.bf16.mxu0 0
    %764 = vmatpush2.bf16.msra.mxu0 0
    %765 = vmatprep.subr.bf16.mxu0 0
    %766 = vmatpush2.bf16.msra.mxu0 0
    %767 = vmatprep.subr.bf16.mxu0 0
    %768 = vmatpush2.bf16.msra.mxu0 0
    %769 = vmatprep.mubr.bf16.mxu0 0
    %770 = vmatmul.mubr.bf16.gmra.mxu0 %v736
    %v771 = vpop.f32.mrf.mxu0
    %v772 = vadd.f32 0.0, %v771
    %v773 = vpop.f32.mrf.mxu0
    %v774 = vpop.f32.mrf.mxu0
    %v775 = vpop.f32.mrf.mxu0
    %776 = vdwg.mxu0
    %v777 = vadd.f32 %v287, %v772
    %v778 = vtanh.pop %v777
    %v779 = vmul.f32 %v778, 0.5
    %v780 = vadd.f32 %v779, 0.5
    %781 = vrot.lane.b32.xlu0 %v780, 96
    %v782 = vpop.permute.xlu0 %781
    %783 = vrot.lane.b32.xlu0 %v780, 64
    %v784 = vpop.permute.xlu0 %783
    %785 = vrot.lane.b32.xlu0 %v778, 32
    %v786 = vpop.permute.xlu0 %785
    %v787 = vmul.f32 %v782, %v732
    %v788 = vmul.f32 %v780, %v786
    %v789 = vadd.f32 %v787, %v788
    %v790 = vtanh.pop %v789
    %v791 = vmul.f32 %v784, %v790
    %792 = vst [vmem:[#allocation2 + $0x38] sm:$0xff] %v791
    %v793 = vld [vmem:[#allocation2] sm:$0xff]
    %v794 = vld [vmem:[#allocation2 + $0x8] sm:$0xff]
    %v795 = vld [vmem:[#allocation2 + $0x10] sm:$0xff]
    %v796 = vld [vmem:[#allocation2 + $0x18] sm:$0xff]
    %v797 = vld [vmem:[#allocation2 + $0x20] sm:$0xff]
    %v798 = vld [vmem:[#allocation2 + $0x28] sm:$0xff]
    %v799 = vld [vmem:[#allocation2 + $0x30] sm:$0xff]
    %v800 = vld [vmem:[#allocation2 + $0x38] sm:$0xff]
    %v801 = vpack.c.bf16 %v794, %v793
    %v802 = vpack.c.bf16 %v796, %v795
    %v803 = vpack.c.bf16 %v798, %v797
    %v804 = vpack.c.bf16 %v800, %v799
    %v805 = vld [vmem:[#allocation3] sm:$0xf]
    %v806 = vld [vmem:[#allocation3 + $0x4] sm:$0xf]
    %v807 = vld [vmem:[#allocation3 + $0x8] sm:$0xf]
    %v808 = vld [vmem:[#allocation3 + $0xc] sm:$0xf]
    %v809 = vld [vmem:[#allocation3 + $0x10] sm:$0xf]
    %v810 = vld [vmem:[#allocation3 + $0x14] sm:$0xf]
    %v811 = vld [vmem:[#allocation3 + $0x18] sm:$0xf]
    %v812 = vld [vmem:[#allocation3 + $0x1c] sm:$0xf]
    %v813 = vld [vmem:[#allocation3 + $0x20] sm:$0xf]
    %v814 = vld [vmem:[#allocation3 + $0x24] sm:$0xf]
    %v815 = vld [vmem:[#allocation3 + $0x28] sm:$0xf]
    %v816 = vld [vmem:[#allocation3 + $0x2c] sm:$0xf]
    %v817 = vld [vmem:[#allocation3 + $0x30] sm:$0xf]
    %v818 = vld [vmem:[#allocation3 + $0x34] sm:$0xf]
    %v819 = vld [vmem:[#allocation3 + $0x38] sm:$0xf]
    %v820 = vld [vmem:[#allocation3 + $0x3c] sm:$0xf]
    %v821 = vld [vmem:[#allocation5] sm:$0xf]
    %v822 = vld [vmem:[#allocation5 + $0x4] sm:$0xf]
    %v823 = vld [vmem:[#allocation5 + $0x8] sm:$0xf]
    %v824 = vld [vmem:[#allocation5 + $0xc] sm:$0xf]
    %v825 = vld [vmem:[#allocation5 + $0x10] sm:$0xf]
    %v826 = vld [vmem:[#allocation5 + $0x14] sm:$0xf]
    %v827 = vld [vmem:[#allocation5 + $0x18] sm:$0xf]
    %v828 = vld [vmem:[#allocation5 + $0x1c] sm:$0xf]
    %v829 = vld [vmem:[#allocation5 + $0x20] sm:$0xf]
    %v830 = vld [vmem:[#allocation5 + $0x24] sm:$0xf]
    %v831 = vld [vmem:[#allocation5 + $0x28] sm:$0xf]
    %v832 = vld [vmem:[#allocation5 + $0x2c] sm:$0xf]
    %v833 = vld [vmem:[#allocation5 + $0x30] sm:$0xf]
    %v834 = vld [vmem:[#allocation5 + $0x34] sm:$0xf]
    %v835 = vld [vmem:[#allocation5 + $0x38] sm:$0xf]
    %v836 = vld [vmem:[#allocation5 + $0x3c] sm:$0xf]
    %v837 = vld [vmem:[%s6] sm:$0x1]
    %v839 = vlaneseq
    %v840 = vshrl.u32 %v839, 7
    %v841 = vsub.s32 0, %v840
    %v842 = vrot.slane %v837, %v841
    %v860 = vunpack.c.l.b16 %v805
    %v861 = vunpack.c.l.b16 %v806
    %v862 = vunpack.c.l.b16 %v807
    %v863 = vunpack.c.l.b16 %v808
    %v864 = vunpack.c.l.b16 %v809
    %v865 = vunpack.c.l.b16 %v810
    %v866 = vunpack.c.l.b16 %v811
    %v867 = vunpack.c.l.b16 %v812
    %v868 = vunpack.c.l.b16 %v813
    %v869 = vunpack.c.l.b16 %v814
    %v870 = vunpack.c.l.b16 %v815
    %v871 = vunpack.c.l.b16 %v816
    %v872 = vunpack.c.l.b16 %v817
    %v873 = vunpack.c.l.b16 %v818
    %v874 = vunpack.c.l.b16 %v819
    %v875 = vunpack.c.l.b16 %v820
    %v876 = vpack.c.b16 %v861, %v860
    %v877 = vpack.c.b16 %v863, %v862
    %v878 = vpack.c.b16 %v865, %v864
    %v879 = vpack.c.b16 %v867, %v866
    %v880 = vpack.c.b16 %v869, %v868
    %v881 = vpack.c.b16 %v871, %v870
    %v882 = vpack.c.b16 %v873, %v872
    %v883 = vpack.c.b16 %v875, %v874
    %892 = vmatprep.subr.bf16.mxu0 0
    %893 = vmatpush1.bf16.msra.mxu0 %v883
    %894 = vmatprep.subr.bf16.mxu0 0
    %895 = vmatpush1.bf16.msra.mxu0 %v882
    %896 = vmatprep.subr.bf16.mxu0 0
    %897 = vmatpush1.bf16.msra.mxu0 %v881
    %898 = vmatprep.subr.bf16.mxu0 0
    %899 = vmatpush1.bf16.msra.mxu0 %v880
    %900 = vmatprep.subr.bf16.mxu0 0
    %901 = vmatpush1.bf16.msra.mxu0 %v879
    %902 = vmatprep.subr.bf16.mxu0 0
    %903 = vmatpush1.bf16.msra.mxu0 %v878
    %904 = vmatprep.subr.bf16.mxu0 0
    %905 = vmatpush1.bf16.msra.mxu0 %v877
    %906 = vmatprep.subr.bf16.mxu0 0
    %907 = vmatpush1.bf16.msra.mxu0 %v876
    %908 = vmatprep.subr.bf16.mxu0 0
    %909 = vmatpush2.bf16.msra.mxu0 0
    %910 = vmatprep.subr.bf16.mxu0 0
    %911 = vmatpush2.bf16.msra.mxu0 0
    %912 = vmatprep.subr.bf16.mxu0 0
    %913 = vmatpush2.bf16.msra.mxu0 0
    %914 = vmatprep.subr.bf16.mxu0 0
    %915 = vmatpush2.bf16.msra.mxu0 0
    %916 = vmatprep.subr.bf16.mxu0 0
    %917 = vmatpush2.bf16.msra.mxu0 0
    %918 = vmatprep.subr.bf16.mxu0 0
    %919 = vmatpush2.bf16.msra.mxu0 0
    %920 = vmatprep.subr.bf16.mxu0 0
    %921 = vmatpush2.bf16.msra.mxu0 0
    %922 = vmatprep.subr.bf16.mxu0 0
    %923 = vmatpush2.bf16.msra.mxu0 0
    %924 = vmatprep.mubr.bf16.mxu0 0
    %925 = vmatmul.mubr.bf16.gmra.mxu0 %v801
    %v926 = vpop.f32.mrf.mxu0
    %v927 = vadd.f32 %v842, %v926
    %v928 = vpop.f32.mrf.mxu0
    %v929 = vpop.f32.mrf.mxu0
    %v930 = vadd.f32 %v842, %v929
    %v931 = vpop.f32.mrf.mxu0
    %932 = vmatprep.mubr.bf16.mxu0 0
    %933 = vmatmul.mubr.bf16.gmra.mxu0 %v802
    %v934 = vpop.f32.mrf.mxu0
    %v935 = vadd.f32 %v842, %v934
    %v936 = vpop.f32.mrf.mxu0
    %v937 = vpop.f32.mrf.mxu0
    %v938 = vadd.f32 %v842, %v937
    %v939 = vpop.f32.mrf.mxu0
    %940 = vmatprep.mubr.bf16.mxu0 0
    %941 = vmatmul.mubr.bf16.gmra.mxu0 %v803
    %v942 = vpop.f32.mrf.mxu0
    %v943 = vadd.f32 %v842, %v942
    %v944 = vpop.f32.mrf.mxu0
    %v945 = vpop.f32.mrf.mxu0
    %v946 = vadd.f32 %v842, %v945
    %v947 = vpop.f32.mrf.mxu0
    %948 = vmatprep.mubr.bf16.mxu0 0
    %949 = vmatmul.mubr.bf16.gmra.mxu0 %v804
    %v950 = vpop.f32.mrf.mxu0
    %v951 = vadd.f32 %v842, %v950
    %v952 = vpop.f32.mrf.mxu0
    %v953 = vpop.f32.mrf.mxu0
    %v954 = vadd.f32 %v842, %v953
    %v955 = vpop.f32.mrf.mxu0
    %956 = vdwg.mxu0
    %v973 = vunpack.c.l.b16 %v821
    %v974 = vunpack.c.l.b16 %v822
    %v975 = vunpack.c.l.b16 %v823
    %v976 = vunpack.c.l.b16 %v824
    %v977 = vunpack.c.l.b16 %v825
    %v978 = vunpack.c.l.b16 %v826
    %v979 = vunpack.c.l.b16 %v827
    %v980 = vunpack.c.l.b16 %v828
    %v981 = vunpack.c.l.b16 %v829
    %v982 = vunpack.c.l.b16 %v830
    %v983 = vunpack.c.l.b16 %v831
    %v984 = vunpack.c.l.b16 %v832
    %v985 = vunpack.c.l.b16 %v833
    %v986 = vunpack.c.l.b16 %v834
    %v987 = vunpack.c.l.b16 %v835
    %v988 = vunpack.c.l.b16 %v836
    %v989 = vpack.c.b16 %v974, %v973
    %v990 = vpack.c.b16 %v976, %v975
    %v991 = vpack.c.b16 %v978, %v977
    %v992 = vpack.c.b16 %v980, %v979
    %v993 = vpack.c.b16 %v982, %v981
    %v994 = vpack.c.b16 %v984, %v983
    %v995 = vpack.c.b16 %v986, %v985
    %v996 = vpack.c.b16 %v988, %v987
    %1005 = vmatprep.subr.bf16.mxu0 0
    %1006 = vmatpush1.bf16.msra.mxu0 %v996
    %1007 = vmatprep.subr.bf16.mxu0 0
    %1008 = vmatpush1.bf16.msra.mxu0 %v995
    %1009 = vmatprep.subr.bf16.mxu0 0
    %1010 = vmatpush1.bf16.msra.mxu0 %v994
    %1011 = vmatprep.subr.bf16.mxu0 0
    %1012 = vmatpush1.bf16.msra.mxu0 %v993
    %1013 = vmatprep.subr.bf16.mxu0 0
    %1014 = vmatpush1.bf16.msra.mxu0 %v992
    %1015 = vmatprep.subr.bf16.mxu0 0
    %1016 = vmatpush1.bf16.msra.mxu0 %v991
    %1017 = vmatprep.subr.bf16.mxu0 0
    %1018 = vmatpush1.bf16.msra.mxu0 %v990
    %1019 = vmatprep.subr.bf16.mxu0 0
    %1020 = vmatpush1.bf16.msra.mxu0 %v989
    %1021 = vmatprep.subr.bf16.mxu0 0
    %1022 = vmatpush2.bf16.msra.mxu0 0
    %1023 = vmatprep.subr.bf16.mxu0 0
    %1024 = vmatpush2.bf16.msra.mxu0 0
    %1025 = vmatprep.subr.bf16.mxu0 0
    %1026 = vmatpush2.bf16.msra.mxu0 0
    %1027 = vmatprep.subr.bf16.mxu0 0
    %1028 = vmatpush2.bf16.msra.mxu0 0
    %1029 = vmatprep.subr.bf16.mxu0 0
    %1030 = vmatpush2.bf16.msra.mxu0 0
    %1031 = vmatprep.subr.bf16.mxu0 0
    %1032 = vmatpush2.bf16.msra.mxu0 0
    %1033 = vmatprep.subr.bf16.mxu0 0
    %1034 = vmatpush2.bf16.msra.mxu0 0
    %1035 = vmatprep.subr.bf16.mxu0 0
    %1036 = vmatpush2.bf16.msra.mxu0 0
    %1037 = vmatprep.mubr.bf16.mxu0 0
    %1038 = vmatmul.mubr.bf16.gmra.mxu0 0
    %v1039 = vpop.f32.mrf.mxu0
    %v1040 = vadd.f32 0.0, %v1039
    %v1041 = vpop.f32.mrf.mxu0
    %v1042 = vpop.f32.mrf.mxu0
    %v1043 = vpop.f32.mrf.mxu0
    %1044 = vdwg.mxu0
    %v1045 = vadd.f32 %v927, %v1040
    %v1046 = vtanh.pop %v1045
    %v1047 = vmul.f32 %v1046, 0.5
    %v1048 = vadd.f32 %v1047, 0.5
    %1049 = vrot.lane.b32.xlu0 %v1048, 96
    %v1050 = vpop.permute.xlu0 %1049
    %1051 = vrot.lane.b32.xlu0 %v1048, 64
    %v1052 = vpop.permute.xlu0 %1051
    %1053 = vrot.lane.b32.xlu0 %v1046, 32
    %v1054 = vpop.permute.xlu0 %1053
    %v1055 = vmul.f32 %v1050, 0.0
    %v1056 = vmul.f32 %v1048, %v1054
    %v1057 = vadd.f32 %v1055, %v1056
    %v1058 = vtanh.pop %v1057
    %v1059 = vmul.f32 %v1052, %v1058
    %v1060 = vpack.c.bf16 %v1059, %v1059
    %1061 = vmatprep.subr.bf16.mxu0 0
    %1062 = vmatpush1.bf16.msra.mxu0 %v996
    %1063 = vmatprep.subr.bf16.mxu0 0
    %1064 = vmatpush1.bf16.msra.mxu0 %v995
    %1065 = vmatprep.subr.bf16.mxu0 0
    %1066 = vmatpush1.bf16.msra.mxu0 %v994
    %1067 = vmatprep.subr.bf16.mxu0 0
    %1068 = vmatpush1.bf16.msra.mxu0 %v993
    %1069 = vmatprep.subr.bf16.mxu0 0
    %1070 = vmatpush1.bf16.msra.mxu0 %v992
    %1071 = vmatprep.subr.bf16.mxu0 0
    %1072 = vmatpush1.bf16.msra.mxu0 %v991
    %1073 = vmatprep.subr.bf16.mxu0 0
    %1074 = vmatpush1.bf16.msra.mxu0 %v990
    %1075 = vmatprep.subr.bf16.mxu0 0
    %1076 = vmatpush1.bf16.msra.mxu0 %v989
    %1077 = vmatprep.subr.bf16.mxu0 0
    %1078 = vmatpush2.bf16.msra.mxu0 0
    %1079 = vmatprep.subr.bf16.mxu0 0
    %1080 = vmatpush2.bf16.msra.mxu0 0
    %1081 = vmatprep.subr.bf16.mxu0 0
    %1082 = vmatpush2.bf16.msra.mxu0 0
    %1083 = vmatprep.subr.bf16.mxu0 0
    %1084 = vmatpush2.bf16.msra.mxu0 0
    %1085 = vmatprep.subr.bf16.mxu0 0
    %1086 = vmatpush2.bf16.msra.mxu0 0
    %1087 = vmatprep.subr.bf16.mxu0 0
    %1088 = vmatpush2.bf16.msra.mxu0 0
    %1089 = vmatprep.subr.bf16.mxu0 0
    %1090 = vmatpush2.bf16.msra.mxu0 0
    %1091 = vmatprep.subr.bf16.mxu0 0
    %1092 = vmatpush2.bf16.msra.mxu0 0
    %1093 = vmatprep.mubr.bf16.mxu0 0
    %1094 = vmatmul.mubr.bf16.gmra.mxu0 %v1060
    %v1095 = vpop.f32.mrf.mxu0
    %v1096 = vadd.f32 0.0, %v1095
    %v1097 = vpop.f32.mrf.mxu0
    %v1098 = vpop.f32.mrf.mxu0
    %v1099 = vpop.f32.mrf.mxu0
    %1100 = vdwg.mxu0
    %v1101 = vadd.f32 %v930, %v1096
    %v1102 = vtanh.pop %v1101
    %v1103 = vmul.f32 %v1102, 0.5
    %v1104 = vadd.f32 %v1103, 0.5
    %1105 = vrot.lane.b32.xlu0 %v1104, 96
    %v1106 = vpop.permute.xlu0 %1105
    %1107 = vrot.lane.b32.xlu0 %v1104, 64
    %v1108 = vpop.permute.xlu0 %1107
    %1109 = vrot.lane.b32.xlu0 %v1102, 32
    %v1110 = vpop.permute.xlu0 %1109
    %v1111 = vmul.f32 %v1106, %v1057
    %v1112 = vmul.f32 %v1104, %v1110
    %v1113 = vadd.f32 %v1111, %v1112
    %v1114 = vtanh.pop %v1113
    %v1115 = vmul.f32 %v1108, %v1114
    %v1116 = vpack.c.bf16 %v1115, %v1115
    %1117 = vmatprep.subr.bf16.mxu0 0
    %1118 = vmatpush1.bf16.msra.mxu0 %v996
    %1119 = vmatprep.subr.bf16.mxu0 0
    %1120 = vmatpush1.bf16.msra.mxu0 %v995
    %1121 = vmatprep.subr.bf16.mxu0 0
    %1122 = vmatpush1.bf16.msra.mxu0 %v994
    %1123 = vmatprep.subr.bf16.mxu0 0
    %1124 = vmatpush1.bf16.msra.mxu0 %v993
    %1125 = vmatprep.subr.bf16.mxu0 0
    %1126 = vmatpush1.bf16.msra.mxu0 %v992
    %1127 = vmatprep.subr.bf16.mxu0 0
    %1128 = vmatpush1.bf16.msra.mxu0 %v991
    %1129 = vmatprep.subr.bf16.mxu0 0
    %1130 = vmatpush1.bf16.msra.mxu0 %v990
    %1131 = vmatprep.subr.bf16.mxu0 0
    %1132 = vmatpush1.bf16.msra.mxu0 %v989
    %1133 = vmatprep.subr.bf16.mxu0 0
    %1134 = vmatpush2.bf16.msra.mxu0 0
    %1135 = vmatprep.subr.bf16.mxu0 0
    %1136 = vmatpush2.bf16.msra.mxu0 0
    %1137 = vmatprep.subr.bf16.mxu0 0
    %1138 = vmatpush2.bf16.msra.mxu0 0
    %1139 = vmatprep.subr.bf16.mxu0 0
    %1140 = vmatpush2.bf16.msra.mxu0 0
    %1141 = vmatprep.subr.bf16.mxu0 0
    %1142 = vmatpush2.bf16.msra.mxu0 0
    %1143 = vmatprep.subr.bf16.mxu0 0
    %1144 = vmatpush2.bf16.msra.mxu0 0
    %1145 = vmatprep.subr.bf16.mxu0 0
    %1146 = vmatpush2.bf16.msra.mxu0 0
    %1147 = vmatprep.subr.bf16.mxu0 0
    %1148 = vmatpush2.bf16.msra.mxu0 0
    %1149 = vmatprep.mubr.bf16.mxu0 0
    %1150 = vmatmul.mubr.bf16.gmra.mxu0 %v1116
    %v1151 = vpop.f32.mrf.mxu0
    %v1152 = vadd.f32 0.0, %v1151
    %v1153 = vpop.f32.mrf.mxu0
    %v1154 = vpop.f32.mrf.mxu0
    %v1155 = vpop.f32.mrf.mxu0
    %1156 = vdwg.mxu0
    %v1157 = vadd.f32 %v935, %v1152
    %v1158 = vtanh.pop %v1157
    %v1159 = vmul.f32 %v1158, 0.5
    %v1160 = vadd.f32 %v1159, 0.5
    %1161 = vrot.lane.b32.xlu0 %v1160, 96
    %v1162 = vpop.permute.xlu0 %1161
    %1163 = vrot.lane.b32.xlu0 %v1160, 64
    %v1164 = vpop.permute.xlu0 %1163
    %1165 = vrot.lane.b32.xlu0 %v1158, 32
    %v1166 = vpop.permute.xlu0 %1165
    %v1167 = vmul.f32 %v1162, %v1113
    %v1168 = vmul.f32 %v1160, %v1166
    %v1169 = vadd.f32 %v1167, %v1168
    %v1170 = vtanh.pop %v1169
    %v1171 = vmul.f32 %v1164, %v1170
    %v1172 = vpack.c.bf16 %v1171, %v1171
    %1173 = vmatprep.subr.bf16.mxu0 0
    %1174 = vmatpush1.bf16.msra.mxu0 %v996
    %1175 = vmatprep.subr.bf16.mxu0 0
    %1176 = vmatpush1.bf16.msra.mxu0 %v995
    %1177 = vmatprep.subr.bf16.mxu0 0
    %1178 = vmatpush1.bf16.msra.mxu0 %v994
    %1179 = vmatprep.subr.bf16.mxu0 0
    %1180 = vmatpush1.bf16.msra.mxu0 %v993
    %1181 = vmatprep.subr.bf16.mxu0 0
    %1182 = vmatpush1.bf16.msra.mxu0 %v992
    %1183 = vmatprep.subr.bf16.mxu0 0
    %1184 = vmatpush1.bf16.msra.mxu0 %v991
    %1185 = vmatprep.subr.bf16.mxu0 0
    %1186 = vmatpush1.bf16.msra.mxu0 %v990
    %1187 = vmatprep.subr.bf16.mxu0 0
    %1188 = vmatpush1.bf16.msra.mxu0 %v989
    %1189 = vmatprep.subr.bf16.mxu0 0
    %1190 = vmatpush2.bf16.msra.mxu0 0
    %1191 = vmatprep.subr.bf16.mxu0 0
    %1192 = vmatpush2.bf16.msra.mxu0 0
    %1193 = vmatprep.subr.bf16.mxu0 0
    %1194 = vmatpush2.bf16.msra.mxu0 0
    %1195 = vmatprep.subr.bf16.mxu0 0
    %1196 = vmatpush2.bf16.msra.mxu0 0
    %1197 = vmatprep.subr.bf16.mxu0 0
    %1198 = vmatpush2.bf16.msra.mxu0 0
    %1199 = vmatprep.subr.bf16.mxu0 0
    %1200 = vmatpush2.bf16.msra.mxu0 0
    %1201 = vmatprep.subr.bf16.mxu0 0
    %1202 = vmatpush2.bf16.msra.mxu0 0
    %1203 = vmatprep.subr.bf16.mxu0 0
    %1204 = vmatpush2.bf16.msra.mxu0 0
    %1205 = vmatprep.mubr.bf16.mxu0 0
    %1206 = vmatmul.mubr.bf16.gmra.mxu0 %v1172
    %v1207 = vpop.f32.mrf.mxu0
    %v1208 = vadd.f32 0.0, %v1207
    %v1209 = vpop.f32.mrf.mxu0
    %v1210 = vpop.f32.mrf.mxu0
    %v1211 = vpop.f32.mrf.mxu0
    %1212 = vdwg.mxu0
    %v1213 = vadd.f32 %v938, %v1208
    %v1214 = vtanh.pop %v1213
    %v1215 = vmul.f32 %v1214, 0.5
    %v1216 = vadd.f32 %v1215, 0.5
    %1217 = vrot.lane.b32.xlu0 %v1216, 96
    %v1218 = vpop.permute.xlu0 %1217
    %1219 = vrot.lane.b32.xlu0 %v1216, 64
    %v1220 = vpop.permute.xlu0 %1219
    %1221 = vrot.lane.b32.xlu0 %v1214, 32
    %v1222 = vpop.permute.xlu0 %1221
    %v1223 = vmul.f32 %v1218, %v1169
    %v1224 = vmul.f32 %v1216, %v1222
    %v1225 = vadd.f32 %v1223, %v1224
    %v1226 = vtanh.pop %v1225
    %v1227 = vmul.f32 %v1220, %v1226
    %v1228 = vpack.c.bf16 %v1227, %v1227
    %1229 = vmatprep.subr.bf16.mxu0 0
    %1230 = vmatpush1.bf16.msra.mxu0 %v996
    %1231 = vmatprep.subr.bf16.mxu0 0
    %1232 = vmatpush1.bf16.msra.mxu0 %v995
    %1233 = vmatprep.subr.bf16.mxu0 0
    %1234 = vmatpush1.bf16.msra.mxu0 %v994
    %1235 = vmatprep.subr.bf16.mxu0 0
    %1236 = vmatpush1.bf16.msra.mxu0 %v993
    %1237 = vmatprep.subr.bf16.mxu0 0
    %1238 = vmatpush1.bf16.msra.mxu0 %v992
    %1239 = vmatprep.subr.bf16.mxu0 0
    %1240 = vmatpush1.bf16.msra.mxu0 %v991
    %1241 = vmatprep.subr.bf16.mxu0 0
    %1242 = vmatpush1.bf16.msra.mxu0 %v990
    %1243 = vmatprep.subr.bf16.mxu0 0
    %1244 = vmatpush1.bf16.msra.mxu0 %v989
    %1245 = vmatprep.subr.bf16.mxu0 0
    %1246 = vmatpush2.bf16.msra.mxu0 0
    %1247 = vmatprep.subr.bf16.mxu0 0
    %1248 = vmatpush2.bf16.msra.mxu0 0
    %1249 = vmatprep.subr.bf16.mxu0 0
    %1250 = vmatpush2.bf16.msra.mxu0 0
    %1251 = vmatprep.subr.bf16.mxu0 0
    %1252 = vmatpush2.bf16.msra.mxu0 0
    %1253 = vmatprep.subr.bf16.mxu0 0
    %1254 = vmatpush2.bf16.msra.mxu0 0
    %1255 = vmatprep.subr.bf16.mxu0 0
    %1256 = vmatpush2.bf16.msra.mxu0 0
    %1257 = vmatprep.subr.bf16.mxu0 0
    %1258 = vmatpush2.bf16.msra.mxu0 0
    %1259 = vmatprep.subr.bf16.mxu0 0
    %1260 = vmatpush2.bf16.msra.mxu0 0
    %1261 = vmatprep.mubr.bf16.mxu0 0
    %1262 = vmatmul.mubr.bf16.gmra.mxu0 %v1228
    %v1263 = vpop.f32.mrf.mxu0
    %v1264 = vadd.f32 0.0, %v1263
    %v1265 = vpop.f32.mrf.mxu0
    %v1266 = vpop.f32.mrf.mxu0
    %v1267 = vpop.f32.mrf.mxu0
    %1268 = vdwg.mxu0
    %v1269 = vadd.f32 %v943, %v1264
    %v1270 = vtanh.pop %v1269
    %v1271 = vmul.f32 %v1270, 0.5
    %v1272 = vadd.f32 %v1271, 0.5
    %1273 = vrot.lane.b32.xlu0 %v1272, 96
    %v1274 = vpop.permute.xlu0 %1273
    %1275 = vrot.lane.b32.xlu0 %v1272, 64
    %v1276 = vpop.permute.xlu0 %1275
    %1277 = vrot.lane.b32.xlu0 %v1270, 32
    %v1278 = vpop.permute.xlu0 %1277
    %v1279 = vmul.f32 %v1274, %v1225
    %v1280 = vmul.f32 %v1272, %v1278
    %v1281 = vadd.f32 %v1279, %v1280
    %v1282 = vtanh.pop %v1281
    %v1283 = vmul.f32 %v1276, %v1282
    %v1284 = vpack.c.bf16 %v1283, %v1283
    %1285 = vmatprep.subr.bf16.mxu0 0
    %1286 = vmatpush1.bf16.msra.mxu0 %v996
    %1287 = vmatprep.subr.bf16.mxu0 0
    %1288 = vmatpush1.bf16.msra.mxu0 %v995
    %1289 = vmatprep.subr.bf16.mxu0 0
    %1290 = vmatpush1.bf16.msra.mxu0 %v994
    %1291 = vmatprep.subr.bf16.mxu0 0
    %1292 = vmatpush1.bf16.msra.mxu0 %v993
    %1293 = vmatprep.subr.bf16.mxu0 0
    %1294 = vmatpush1.bf16.msra.mxu0 %v992
    %1295 = vmatprep.subr.bf16.mxu0 0
    %1296 = vmatpush1.bf16.msra.mxu0 %v991
    %1297 = vmatprep.subr.bf16.mxu0 0
    %1298 = vmatpush1.bf16.msra.mxu0 %v990
    %1299 = vmatprep.subr.bf16.mxu0 0
    %1300 = vmatpush1.bf16.msra.mxu0 %v989
    %1301 = vmatprep.subr.bf16.mxu0 0
    %1302 = vmatpush2.bf16.msra.mxu0 0
    %1303 = vmatprep.subr.bf16.mxu0 0
    %1304 = vmatpush2.bf16.msra.mxu0 0
    %1305 = vmatprep.subr.bf16.mxu0 0
    %1306 = vmatpush2.bf16.msra.mxu0 0
    %1307 = vmatprep.subr.bf16.mxu0 0
    %1308 = vmatpush2.bf16.msra.mxu0 0
    %1309 = vmatprep.subr.bf16.mxu0 0
    %1310 = vmatpush2.bf16.msra.mxu0 0
    %1311 = vmatprep.subr.bf16.mxu0 0
    %1312 = vmatpush2.bf16.msra.mxu0 0
    %1313 = vmatprep.subr.bf16.mxu0 0
    %1314 = vmatpush2.bf16.msra.mxu0 0
    %1315 = vmatprep.subr.bf16.mxu0 0
    %1316 = vmatpush2.bf16.msra.mxu0 0
    %1317 = vmatprep.mubr.bf16.mxu0 0
    %1318 = vmatmul.mubr.bf16.gmra.mxu0 %v1284
    %v1319 = vpop.f32.mrf.mxu0
    %v1320 = vadd.f32 0.0, %v1319
    %v1321 = vpop.f32.mrf.mxu0
    %v1322 = vpop.f32.mrf.mxu0
    %v1323 = vpop.f32.mrf.mxu0
    %1324 = vdwg.mxu0
    %v1325 = vadd.f32 %v946, %v1320
    %v1326 = vtanh.pop %v1325
    %v1327 = vmul.f32 %v1326, 0.5
    %v1328 = vadd.f32 %v1327, 0.5
    %1329 = vrot.lane.b32.xlu0 %v1328, 96
    %v1330 = vpop.permute.xlu0 %1329
    %1331 = vrot.lane.b32.xlu0 %v1328, 64
    %v1332 = vpop.permute.xlu0 %1331
    %1333 = vrot.lane.b32.xlu0 %v1326, 32
    %v1334 = vpop.permute.xlu0 %1333
    %v1335 = vmul.f32 %v1330, %v1281
    %v1336 = vmul.f32 %v1328, %v1334
    %v1337 = vadd.f32 %v1335, %v1336
    %v1338 = vtanh.pop %v1337
    %v1339 = vmul.f32 %v1332, %v1338
    %v1340 = vpack.c.bf16 %v1339, %v1339
    %1341 = vmatprep.subr.bf16.mxu0 0
    %1342 = vmatpush1.bf16.msra.mxu0 %v996
    %1343 = vmatprep.subr.bf16.mxu0 0
    %1344 = vmatpush1.bf16.msra.mxu0 %v995
    %1345 = vmatprep.subr.bf16.mxu0 0
    %1346 = vmatpush1.bf16.msra.mxu0 %v994
    %1347 = vmatprep.subr.bf16.mxu0 0
    %1348 = vmatpush1.bf16.msra.mxu0 %v993
    %1349 = vmatprep.subr.bf16.mxu0 0
    %1350 = vmatpush1.bf16.msra.mxu0 %v992
    %1351 = vmatprep.subr.bf16.mxu0 0
    %1352 = vmatpush1.bf16.msra.mxu0 %v991
    %1353 = vmatprep.subr.bf16.mxu0 0
    %1354 = vmatpush1.bf16.msra.mxu0 %v990
    %1355 = vmatprep.subr.bf16.mxu0 0
    %1356 = vmatpush1.bf16.msra.mxu0 %v989
    %1357 = vmatprep.subr.bf16.mxu0 0
    %1358 = vmatpush2.bf16.msra.mxu0 0
    %1359 = vmatprep.subr.bf16.mxu0 0
    %1360 = vmatpush2.bf16.msra.mxu0 0
    %1361 = vmatprep.subr.bf16.mxu0 0
    %1362 = vmatpush2.bf16.msra.mxu0 0
    %1363 = vmatprep.subr.bf16.mxu0 0
    %1364 = vmatpush2.bf16.msra.mxu0 0
    %1365 = vmatprep.subr.bf16.mxu0 0
    %1366 = vmatpush2.bf16.msra.mxu0 0
    %1367 = vmatprep.subr.bf16.mxu0 0
    %1368 = vmatpush2.bf16.msra.mxu0 0
    %1369 = vmatprep.subr.bf16.mxu0 0
    %1370 = vmatpush2.bf16.msra.mxu0 0
    %1371 = vmatprep.subr.bf16.mxu0 0
    %1372 = vmatpush2.bf16.msra.mxu0 0
    %1373 = vmatprep.mubr.bf16.mxu0 0
    %1374 = vmatmul.mubr.bf16.gmra.mxu0 %v1340
    %v1375 = vpop.f32.mrf.mxu0
    %v1376 = vadd.f32 0.0, %v1375
    %v1377 = vpop.f32.mrf.mxu0
    %v1378 = vpop.f32.mrf.mxu0
    %v1379 = vpop.f32.mrf.mxu0
    %1380 = vdwg.mxu0
    %v1381 = vadd.f32 %v951, %v1376
    %v1382 = vtanh.pop %v1381
    %v1383 = vmul.f32 %v1382, 0.5
    %v1384 = vadd.f32 %v1383, 0.5
    %1385 = vrot.lane.b32.xlu0 %v1384, 96
    %v1386 = vpop.permute.xlu0 %1385
    %1387 = vrot.lane.b32.xlu0 %v1384, 64
    %v1388 = vpop.permute.xlu0 %1387
    %1389 = vrot.lane.b32.xlu0 %v1382, 32
    %v1390 = vpop.permute.xlu0 %1389
    %v1391 = vmul.f32 %v1386, %v1337
    %v1392 = vmul.f32 %v1384, %v1390
    %v1393 = vadd.f32 %v1391, %v1392
    %v1394 = vtanh.pop %v1393
    %v1395 = vmul.f32 %v1388, %v1394
    %v1396 = vpack.c.bf16 %v1395, %v1395
    %1397 = vmatprep.subr.bf16.mxu0 0
    %1398 = vmatpush1.bf16.msra.mxu0 %v996
    %1399 = vmatprep.subr.bf16.mxu0 0
    %1400 = vmatpush1.bf16.msra.mxu0 %v995
    %1401 = vmatprep.subr.bf16.mxu0 0
    %1402 = vmatpush1.bf16.msra.mxu0 %v994
    %1403 = vmatprep.subr.bf16.mxu0 0
    %1404 = vmatpush1.bf16.msra.mxu0 %v993
    %1405 = vmatprep.subr.bf16.mxu0 0
    %1406 = vmatpush1.bf16.msra.mxu0 %v992
    %1407 = vmatprep.subr.bf16.mxu0 0
    %1408 = vmatpush1.bf16.msra.mxu0 %v991
    %1409 = vmatprep.subr.bf16.mxu0 0
    %1410 = vmatpush1.bf16.msra.mxu0 %v990
    %1411 = vmatprep.subr.bf16.mxu0 0
    %1412 = vmatpush1.bf16.msra.mxu0 %v989
    %1413 = vmatprep.subr.bf16.mxu0 0
    %1414 = vmatpush2.bf16.msra.mxu0 0
    %1415 = vmatprep.subr.bf16.mxu0 0
    %1416 = vmatpush2.bf16.msra.mxu0 0
    %1417 = vmatprep.subr.bf16.mxu0 0
    %1418 = vmatpush2.bf16.msra.mxu0 0
    %1419 = vmatprep.subr.bf16.mxu0 0
    %1420 = vmatpush2.bf16.msra.mxu0 0
    %1421 = vmatprep.subr.bf16.mxu0 0
    %1422 = vmatpush2.bf16.msra.mxu0 0
    %1423 = vmatprep.subr.bf16.mxu0 0
    %1424 = vmatpush2.bf16.msra.mxu0 0
    %1425 = vmatprep.subr.bf16.mxu0 0
    %1426 = vmatpush2.bf16.msra.mxu0 0
    %1427 = vmatprep.subr.bf16.mxu0 0
    %1428 = vmatpush2.bf16.msra.mxu0 0
    %1429 = vmatprep.mubr.bf16.mxu0 0
    %1430 = vmatmul.mubr.bf16.gmra.mxu0 %v1396
    %v1431 = vpop.f32.mrf.mxu0
    %v1432 = vadd.f32 0.0, %v1431
    %v1433 = vpop.f32.mrf.mxu0
    %v1434 = vpop.f32.mrf.mxu0
    %v1435 = vpop.f32.mrf.mxu0
    %1436 = vdwg.mxu0
    %v1437 = vadd.f32 %v954, %v1432
    %v1438 = vtanh.pop %v1437
    %v1439 = vmul.f32 %v1438, 0.5
    %v1440 = vadd.f32 %v1439, 0.5
    %1441 = vrot.lane.b32.xlu0 %v1440, 96
    %v1442 = vpop.permute.xlu0 %1441
    %1443 = vrot.lane.b32.xlu0 %v1440, 64
    %v1444 = vpop.permute.xlu0 %1443
    %1445 = vrot.lane.b32.xlu0 %v1438, 32
    %v1446 = vpop.permute.xlu0 %1445
    %v1447 = vmul.f32 %v1442, %v1393
    %v1448 = vmul.f32 %v1440, %v1446
    %v1449 = vadd.f32 %v1447, %v1448
    %v1450 = vtanh.pop %v1449
    %v1451 = vmul.f32 %v1444, %v1450
    %v1452 = vld [vmem:[%s7] sm:$0x1]
    %v1453 = vld [vmem:[%s8] sm:$0x1]
    %v1454 = vld [vmem:[%s9] sm:$0x1]
    %v1455 = vld [vmem:[%s10] sm:$0x1]
    %v1456 = vld [vmem:[#allocation7] sm:$0xf]
    %v1457 = vld [vmem:[#allocation7 + $0x4] sm:$0xf]
    %v1458 = vld [vmem:[#allocation7 + $0x8] sm:$0xf]
    %v1459 = vld [vmem:[#allocation7 + $0xc] sm:$0xf]
    %v1460 = vld [vmem:[#allocation7 + $0x10] sm:$0xf]
    %v1461 = vld [vmem:[#allocation7 + $0x14] sm:$0xf]
    %v1462 = vld [vmem:[#allocation7 + $0x18] sm:$0xf]
    %v1463 = vld [vmem:[#allocation7 + $0x1c] sm:$0xf]
    %v1464 = vld [vmem:[#allocation7 + $0x20] sm:$0xf]
    %v1465 = vld [vmem:[#allocation7 + $0x24] sm:$0xf]
    %v1466 = vld [vmem:[#allocation7 + $0x28] sm:$0xf]
    %v1467 = vld [vmem:[#allocation7 + $0x2c] sm:$0xf]
    %v1468 = vld [vmem:[#allocation7 + $0x30] sm:$0xf]
    %v1469 = vld [vmem:[#allocation7 + $0x34] sm:$0xf]
    %v1470 = vld [vmem:[#allocation7 + $0x38] sm:$0xf]
    %v1471 = vld [vmem:[#allocation7 + $0x3c] sm:$0xf]
    %v1472 = vld [vmem:[%s12] sm:$0x1]
    %v1473 = vld [vmem:[#allocation8] sm:$0xf]
    %v1474 = vld [vmem:[#allocation8 + $0x4] sm:$0xf]
    %v1475 = vld [vmem:[#allocation8 + $0x8] sm:$0xf]
    %v1476 = vld [vmem:[#allocation8 + $0xc] sm:$0xf]
    %v1477 = vld [vmem:[#allocation8 + $0x10] sm:$0xf]
    %v1478 = vld [vmem:[#allocation8 + $0x14] sm:$0xf]
    %v1479 = vld [vmem:[#allocation8 + $0x18] sm:$0xf]
    %v1480 = vld [vmem:[#allocation8 + $0x1c] sm:$0xf]
    %v1481 = vld [vmem:[#allocation8 + $0x20] sm:$0xf]
    %v1482 = vld [vmem:[#allocation8 + $0x24] sm:$0xf]
    %v1483 = vld [vmem:[#allocation8 + $0x28] sm:$0xf]
    %v1484 = vld [vmem:[#allocation8 + $0x2c] sm:$0xf]
    %v1485 = vld [vmem:[#allocation8 + $0x30] sm:$0xf]
    %v1486 = vld [vmem:[#allocation8 + $0x34] sm:$0xf]
    %v1487 = vld [vmem:[#allocation8 + $0x38] sm:$0xf]
    %v1488 = vld [vmem:[#allocation8 + $0x3c] sm:$0xf]
    %v1489 = vld [vmem:[%s14] sm:$0x1]
    %v1491 = vlaneseq
    %v1492 = vshrl.u32 %v1491, 7
    %v1493 = vsub.s32 0, %v1492
    %v1494 = vrot.slane %v1454, %v1493
    %v1496 = vsub.f32 %v1451, %v1494
    %v1497 = vadd.f32 %v1455, 1e-05
    %v1498 = vrsqrt.pop %v1497
    %v1500 = vlaneseq
    %v1501 = vshrl.u32 %v1500, 7
    %v1502 = vsub.s32 0, %v1501
    %v1503 = vrot.slane %v1498, %v1502
    %v1505 = vmul.f32 %v1496, %v1503
    %v1507 = vlaneseq
    %v1508 = vshrl.u32 %v1507, 7
    %v1509 = vsub.s32 0, %v1508
    %v1510 = vrot.slane %v1452, %v1509
    %v1512 = vmul.f32 %v1505, %v1510
    %v1514 = vlaneseq
    %v1515 = vshrl.u32 %v1514, 7
    %v1516 = vsub.s32 0, %v1515
    %v1517 = vrot.slane %v1453, %v1516
    %v1519 = vadd.f32 %v1512, %v1517
    %v1520 = vpack.c.bf16 %v1519, %v1519
    %v1522 = vlaneseq
    %v1523 = vshrl.u32 %v1522, 7
    %v1524 = vsub.s32 0, %v1523
    %v1525 = vrot.slane %v1472, %v1524
    %v1543 = vunpack.c.l.b16 %v1456
    %v1544 = vunpack.c.l.b16 %v1457
    %v1545 = vunpack.c.l.b16 %v1458
    %v1546 = vunpack.c.l.b16 %v1459
    %v1547 = vunpack.c.l.b16 %v1460
    %v1548 = vunpack.c.l.b16 %v1461
    %v1549 = vunpack.c.l.b16 %v1462
    %v1550 = vunpack.c.l.b16 %v1463
    %v1551 = vunpack.c.l.b16 %v1464
    %v1552 = vunpack.c.l.b16 %v1465
    %v1553 = vunpack.c.l.b16 %v1466
    %v1554 = vunpack.c.l.b16 %v1467
    %v1555 = vunpack.c.l.b16 %v1468
    %v1556 = vunpack.c.l.b16 %v1469
    %v1557 = vunpack.c.l.b16 %v1470
    %v1558 = vunpack.c.l.b16 %v1471
    %v1559 = vpack.c.b16 %v1544, %v1543
    %v1560 = vpack.c.b16 %v1546, %v1545
    %v1561 = vpack.c.b16 %v1548, %v1547
    %v1562 = vpack.c.b16 %v1550, %v1549
    %v1563 = vpack.c.b16 %v1552, %v1551
    %v1564 = vpack.c.b16 %v1554, %v1553
    %v1565 = vpack.c.b16 %v1556, %v1555
    %v1566 = vpack.c.b16 %v1558, %v1557
    %1575 = vmatprep.subr.bf16.mxu0 0
    %1576 = vmatpush1.bf16.msra.mxu0 %v1566
    %1577 = vmatprep.subr.bf16.mxu0 0
    %1578 = vmatpush1.bf16.msra.mxu0 %v1565
    %1579 = vmatprep.subr.bf16.mxu0 0
    %1580 = vmatpush1.bf16.msra.mxu0 %v1564
    %1581 = vmatprep.subr.bf16.mxu0 0
    %1582 = vmatpush1.bf16.msra.mxu0 %v1563
    %1583 = vmatprep.subr.bf16.mxu0 0
    %1584 = vmatpush1.bf16.msra.mxu0 %v1562
    %1585 = vmatprep.subr.bf16.mxu0 0
    %1586 = vmatpush1.bf16.msra.mxu0 %v1561
    %1587 = vmatprep.subr.bf16.mxu0 0
    %1588 = vmatpush1.bf16.msra.mxu0 %v1560
    %1589 = vmatprep.subr.bf16.mxu0 0
    %1590 = vmatpush1.bf16.msra.mxu0 %v1559
    %1591 = vmatprep.subr.bf16.mxu0 0
    %1592 = vmatpush2.bf16.msra.mxu0 0
    %1593 = vmatprep.subr.bf16.mxu0 0
    %1594 = vmatpush2.bf16.msra.mxu0 0
    %1595 = vmatprep.subr.bf16.mxu0 0
    %1596 = vmatpush2.bf16.msra.mxu0 0
    %1597 = vmatprep.subr.bf16.mxu0 0
    %1598 = vmatpush2.bf16.msra.mxu0 0
    %1599 = vmatprep.subr.bf16.mxu0 0
    %1600 = vmatpush2.bf16.msra.mxu0 0
    %1601 = vmatprep.subr.bf16.mxu0 0
    %1602 = vmatpush2.bf16.msra.mxu0 0
    %1603 = vmatprep.subr.bf16.mxu0 0
    %1604 = vmatpush2.bf16.msra.mxu0 0
    %1605 = vmatprep.subr.bf16.mxu0 0
    %1606 = vmatpush2.bf16.msra.mxu0 0
    %1607 = vmatprep.mubr.bf16.mxu0 0
    %1608 = vmatmul.mubr.bf16.gmra.mxu0 %v1520
    %v1609 = vpop.f32.mrf.mxu0
    %v1610 = vadd.f32 %v1525, %v1609
    %v1611 = vpop.f32.mrf.mxu0
    %v1612 = vpop.f32.mrf.mxu0
    %v1613 = vpop.f32.mrf.mxu0
    %1614 = vdwg.mxu0
    %v1615 = vmax.f32 %v1610, 0.0
    %v1616 = vpack.c.bf16 %v1615, %v1615
    %v1618 = vlaneseq
    %v1619 = vshrl.u32 %v1618, 7
    %v1620 = vsub.s32 0, %v1619
    %v1621 = vrot.slane %v1489, %v1620
    %v1639 = vunpack.c.l.b16 %v1473
    %v1640 = vunpack.c.l.b16 %v1474
    %v1641 = vunpack.c.l.b16 %v1475
    %v1642 = vunpack.c.l.b16 %v1476
    %v1643 = vunpack.c.l.b16 %v1477
    %v1644 = vunpack.c.l.b16 %v1478
    %v1645 = vunpack.c.l.b16 %v1479
    %v1646 = vunpack.c.l.b16 %v1480
    %v1647 = vunpack.c.l.b16 %v1481
    %v1648 = vunpack.c.l.b16 %v1482
    %v1649 = vunpack.c.l.b16 %v1483
    %v1650 = vunpack.c.l.b16 %v1484
    %v1651 = vunpack.c.l.b16 %v1485
    %v1652 = vunpack.c.l.b16 %v1486
    %v1653 = vunpack.c.l.b16 %v1487
    %v1654 = vunpack.c.l.b16 %v1488
    %v1655 = vpack.c.b16 %v1640, %v1639
    %v1656 = vpack.c.b16 %v1642, %v1641
    %v1657 = vpack.c.b16 %v1644, %v1643
    %v1658 = vpack.c.b16 %v1646, %v1645
    %v1659 = vpack.c.b16 %v1648, %v1647
    %v1660 = vpack.c.b16 %v1650, %v1649
    %v1661 = vpack.c.b16 %v1652, %v1651
    %v1662 = vpack.c.b16 %v1654, %v1653
    %1671 = vmatprep.subr.bf16.mxu0 0
    %1672 = vmatpush1.bf16.msra.mxu0 %v1662
    %1673 = vmatprep.subr.bf16.mxu0 0
    %1674 = vmatpush1.bf16.msra.mxu0 %v1661
    %1675 = vmatprep.subr.bf16.mxu0 0
    %1676 = vmatpush1.bf16.msra.mxu0 %v1660
    %1677 = vmatprep.subr.bf16.mxu0 0
    %1678 = vmatpush1.bf16.msra.mxu0 %v1659
    %1679 = vmatprep.subr.bf16.mxu0 0
    %1680 = vmatpush1.bf16.msra.mxu0 %v1658
    %1681 = vmatprep.subr.bf16.mxu0 0
    %1682 = vmatpush1.bf16.msra.mxu0 %v1657
    %1683 = vmatprep.subr.bf16.mxu0 0
    %1684 = vmatpush1.bf16.msra.mxu0 %v1656
    %1685 = vmatprep.subr.bf16.mxu0 0
    %1686 = vmatpush1.bf16.msra.mxu0 %v1655
    %1687 = vmatprep.subr.bf16.mxu0 0
    %1688 = vmatpush2.bf16.msra.mxu0 0
    %1689 = vmatprep.subr.bf16.mxu0 0
    %1690 = vmatpush2.bf16.msra.mxu0 0
    %1691 = vmatprep.subr.bf16.mxu0 0
    %1692 = vmatpush2.bf16.msra.mxu0 0
    %1693 = vmatprep.subr.bf16.mxu0 0
    %1694 = vmatpush2.bf16.msra.mxu0 0
    %1695 = vmatprep.subr.bf16.mxu0 0
    %1696 = vmatpush2.bf16.msra.mxu0 0
    %1697 = vmatprep.subr.bf16.mxu0 0
    %1698 = vmatpush2.bf16.msra.mxu0 0
    %1699 = vmatprep.subr.bf16.mxu0 0
    %1700 = vmatpush2.bf16.msra.mxu0 0
    %1701 = vmatprep.subr.bf16.mxu0 0
    %1702 = vmatpush2.bf16.msra.mxu0 0
    %1703 = vmatprep.mubr.bf16.mxu0 0
    %1704 = vmatmul.mubr.bf16.gmra.mxu0 %v1616
    %v1705 = vpop.f32.mrf.mxu0
    %v1706 = vadd.f32 %v1621, %v1705
    %v1707 = vpop.f32.mrf.mxu0
    %v1708 = vpop.f32.mrf.mxu0
    %v1709 = vpop.f32.mrf.mxu0
    %1710 = vdwg.mxu0
    %1711 = vst [vmem:[%s15] sm:$0xff] %v1706
    // Predicated region
    $region78: #{music_genre_lstm_forward.1} parent=1 // pred_check
      _
    $region79: #{music_genre_lstm_forward.1} parent=1 // pred_check_branch
      %1713 = sbr.rel (0) target = $region81
    $region80: #{music_genre_lstm_forward.1} parent=1 // pred_region
      _
    $region81: #{music_genre_lstm_forward.1} parent=1 // pred_fallthru
      _
    // Predicated region
    $region82: #{music_genre_lstm_forward.1} parent=1 // pred_check
      _
    $region83: #{music_genre_lstm_forward.1} parent=1 // pred_check_branch
      %1715 = sbr.rel (0) target = $region85
    $region84: #{music_genre_lstm_forward.1} parent=1 // pred_region
      _
    $region85: #{music_genre_lstm_forward.1} parent=1 // pred_fallthru
      _
    %1716 = vsyncpa [#allocation4], 1
    %1717 = vsyncpa [#allocation6], 1
    %1718 = vsyncpa [#allocation9], 1

</llo_original>
